<compile_context>
chip_gen: v5e
topology: v5e:2x2
jax: 0.10.0
libtpu: 0.0.40
codegen_flags: <defaults>
</compile_context>

<pallas_src>
import math

import jax
import jax.numpy as jnp
from jax.experimental import pallas as pl
from jax.experimental.pallas import tpu as pltpu

_MAX_TILE_B = 512   # batch tile on the 128-lane axis (multiple of 256)


def _autoencoder_kernel(x_ref, w0_ref, w_ref, b_ref, out_ref):
    """x_ref:   (in_pad,  tile_b)      f32   input activations (features on sublanes)
       w0_ref:  (f_pad,   in_pad)      bf16  layer-0 weight, PyTorch (out, in) order
       w_ref:   (L-1, f_pad, f_pad)    bf16  layer 1..L-1 weights, zero padded
       b_ref:   (L,   f_pad, 1)        f32   biases, zero padded
       out_ref: (out_pad, tile_b)      f32"""
    num_layers = b_ref.shape[0]
    # No activation after encoder latent Linear and decoder output Linear.
    no_act = (num_layers // 2 - 1, num_layers - 1)

    # Layer 0: K = in_pad (<= f_pad) -> fewer MXU fill cycles.
    acc = jnp.dot(w0_ref[...], x_ref[...].astype(jnp.bfloat16),
                  preferred_element_type=jnp.float32)
    acc += b_ref[0]
    h = jnp.maximum(acc, 0.01 * acc)            # LeakyReLU(0.01) in f32 on the VPU

    for l in range(1, num_layers):
        # MXU: bf16 x bf16 -> f32 accumulate. Padded rows/cols of W and b are
        # zero, so padded feature lanes stay exactly zero through every layer.
        acc = jnp.dot(w_ref[l - 1], h.astype(jnp.bfloat16),
                      preferred_element_type=jnp.float32)
        acc += b_ref[l]
        if l not in no_act:
            acc = jnp.maximum(acc, 0.01 * acc)
        h = acc

    # Only the first out_pad feature rows are meaningful (8-aligned sublane slice).
    out_ref[...] = h[:out_ref.shape[0], :]


@jax.jit
def autoencoder_forward(x, w0, w_rest, b_packed):
    """x: (batch, input_dim) f32 -> (batch, input_dim) f32 reconstruction."""
    batch, input_dim = x.shape
    f_pad, in_pad = w0.shape
    out_pad = in_pad                      # autoencoder: output_dim == input_dim

    # Lane-dense batch tile (multiple of 256), capped for small batches.
    tile_b = min(_MAX_TILE_B, 256 * pl.cdiv(batch, 256))
    batch_pad = tile_b * pl.cdiv(batch, tile_b)

    # (batch, input_dim) -> zero-padded transposed (in_pad, batch_pad):
    # batch on the 128-lane axis, features on the sublane axis.
    x_t = jnp.pad(x.astype(jnp.float32).T,
                  ((0, in_pad - input_dim), (0, batch_pad - batch)))

    out_t = pl.pallas_call(
        _autoencoder_kernel,
        out_shape=jax.ShapeDtypeStruct((out_pad, batch_pad), jnp.float32),
        grid=(batch_pad // tile_b,),
        in_specs=[
            pl.BlockSpec((in_pad, tile_b), lambda i: (0, i)),    # x: pipelined
            pl.BlockSpec(w0.shape, lambda i: (0, 0)),            # params: constant
            pl.BlockSpec(w_rest.shape, lambda i: (0, 0, 0)),     #   index_maps ->
            pl.BlockSpec(b_packed.shape, lambda i: (0, 0, 0)),   #   VMEM resident
        ],
        out_specs=pl.BlockSpec((out_pad, tile_b), lambda i: (0, i)),
        compiler_params=pltpu.CompilerParams(
            dimension_semantics=("parallel",),
            vmem_limit_bytes=32 * 1024 * 1024,
        ),
    )(x_t, w0, w_rest, b_packed)

    return out_t[:input_dim, :batch].T


def init_params(key, dims):
    """PyTorch nn.Linear default init, native (out_features, in_features) layout."""
    params = []
    for in_dim, out_dim in zip(dims[:-1], dims[1:]):
        key, kw, kb = jax.random.split(key, 3)
        bound = 1.0 / math.sqrt(in_dim)
        w = jax.random.uniform(kw, (out_dim, in_dim), jnp.float32, -bound, bound)
        b = jax.random.uniform(kb, (out_dim,), jnp.float32, -bound, bound)
        params.append((w, b))
    return params


def _round8(n):
    return 8 * pl.cdiv(n, 8)


def pack_params(params):
    """Zero-pad & pack:
       w0     -> (f_pad, in_pad)      bf16   layer-0 weight
       w_rest -> (L-1, f_pad, f_pad)  bf16   layer 1..L-1 weights
       b      -> (L, f_pad, 1)        f32    all biases
    f_pad = round8(max out_features) (covers every hidden width and the output)."""
    n = len(params)
    f_pad = _round8(max(w.shape[0] for w, _ in params))
    in_dim = params[0][0].shape[1]
    in_pad = _round8(in_dim)

    w0 = jnp.zeros((f_pad, in_pad), jnp.bfloat16)
    w0 = w0.at[:params[0][0].shape[0], :in_dim].set(params[0][0].astype(jnp.bfloat16))

    w_rest = jnp.zeros((n - 1, f_pad, f_pad), jnp.bfloat16)
    b_packed = jnp.zeros((n, f_pad, 1), jnp.float32)
    b_packed = b_packed.at[0, :params[0][1].shape[0], 0].set(params[0][1])
    for l in range(1, n):
        w, b = params[l]
        out_d, in_d = w.shape
        w_rest = w_rest.at[l - 1, :out_d, :in_d].set(w.astype(jnp.bfloat16))
        b_packed = b_packed.at[l, :out_d, 0].set(b)
    return w0, w_rest, b_packed


def reference_forward(x, params):
    """Pure-JAX reference mirroring the kernel's numerics (bf16 matmul inputs, f32 acc)."""
    n = len(params)
    no_act = (n // 2 - 1, n - 1)
    h = x.astype(jnp.float32)
    for i, (w, b) in enumerate(params):
        acc = jnp.dot(h.astype(jnp.bfloat16), w.astype(jnp.bfloat16).T,
                      preferred_element_type=jnp.float32) + b
        if i not in no_act:
            acc = jnp.where(acc > 0, acc, 0.01 * acc)
        h = acc
    return h


if __name__ == "__main__":
    # Module-consistent shapes; batch deliberately not a tile multiple so the
    # grid has 2 steps and exercises the pad-to-tile + slice-back path.
    batch = 600
    input_dim = 32
    layer1, layer2, layer3, layer4 = 64, 48, 32, 16
    latent_dim = 8
    dims = [input_dim, layer1, layer2, layer3, layer4, latent_dim,
            layer4, layer3, layer2, layer1, input_dim]

    key = jax.random.PRNGKey(0)
    key, kx = jax.random.split(key)
    x = jax.random.normal(kx, (batch, input_dim), jnp.float32)

    params = init_params(key, dims)
    w0, w_rest, b_packed = pack_params(params)

    out = autoencoder_forward(x, w0, w_rest, b_packed)
    out = jax.block_until_ready(out)

    ref = reference_forward(x, params)
    assert out.shape == (batch, input_dim)
    max_diff = jnp.max(jnp.abs(out - ref))
    assert jnp.allclose(out, ref, atol=1e-4, rtol=1e-4), (
        f"mismatch vs reference, max abs diff = {max_diff}")

    print("KERNEL_OK")
</pallas_src>

<mosaic_0001>
module attributes {stable_mosaic.version = 11 : i64} {
  func.func @_autoencoder_kernel(%arg0: i32, %arg1: memref<32x512xf32, #tpu.memory_space<vmem>>, %arg2: memref<64x32xbf16, #tpu.memory_space<vmem>>, %arg3: memref<9x64x64xbf16, #tpu.memory_space<vmem>>, %arg4: memref<10x64x1xf32, #tpu.memory_space<vmem>>, %arg5: memref<32x512xf32, #tpu.memory_space<vmem>>) attributes {dimension_semantics = [#tpu.dimension_semantics<parallel>], iteration_bounds = array<i64: 2>, scalar_prefetch = 0 : i64, scratch_operands = 0 : i64, tpu.core_type = #tpu.core_type<tc>, window_params = [{transform_indices = @transform_0, window_bounds = array<i64: 32, 512>}, {pipeline_mode = #tpu.pipeline_mode<synchronous>, transform_indices = @transform_1, window_bounds = array<i64: 64, 32>}, {pipeline_mode = #tpu.pipeline_mode<synchronous>, transform_indices = @transform_2, window_bounds = array<i64: 9, 64, 64>}, {pipeline_mode = #tpu.pipeline_mode<synchronous>, transform_indices = @transform_3, window_bounds = array<i64: 10, 64, 1>}, {transform_indices = @transform_4, window_bounds = array<i64: 32, 512>}]} {
    %c0 = arith.constant 0 : index
    %c0_0 = arith.constant 0 : index
    %0 = vector.load %arg2[%c0, %c0_0] : memref<64x32xbf16, #tpu.memory_space<vmem>>, vector<64x32xbf16>
    %c0_1 = arith.constant 0 : index
    %c0_2 = arith.constant 0 : index
    %1 = vector.load %arg1[%c0_1, %c0_2] : memref<32x512xf32, #tpu.memory_space<vmem>>, vector<32x512xf32>
    %2 = arith.truncf %1 : vector<32x512xf32> to vector<32x512xbf16>
    %cst = arith.constant dense<0.000000e+00> : vector<64x512xf32>
    %3 = tpu.matmul %0, %2, %cst {dimension_numbers = #tpu.dot_dimension_numbers<[1], [0], [0], [1], [0, 0, 1, 1], [], []>} : vector<64x32xbf16>, vector<32x512xbf16>, vector<64x512xf32> -> vector<64x512xf32>
    %c0_3 = arith.constant 0 : index
    %c0_4 = arith.constant 0 : index
    %c0_5 = arith.constant 0 : index
    %4 = vector.load %arg4[%c0_3, %c0_4, %c0_5] : memref<10x64x1xf32, #tpu.memory_space<vmem>>, vector<1x64x1xf32>
    %5 = vector.shape_cast %4 : vector<1x64x1xf32> to vector<64x1xf32>
    %6 = vector.broadcast %5 : vector<64x1xf32> to vector<64x512xf32>
    %7 = arith.addf %3, %6 : vector<64x512xf32>
    %cst_6 = arith.constant 0.00999999977 : f32
    %8 = vector.broadcast %cst_6 : f32 to vector<64x512xf32>
    %9 = arith.mulf %8, %7 : vector<64x512xf32>
    %10 = arith.maximumf %7, %9 : vector<64x512xf32>
    %c0_7 = arith.constant 0 : index
    %c0_8 = arith.constant 0 : index
    %c0_9 = arith.constant 0 : index
    %11 = vector.load %arg3[%c0_7, %c0_8, %c0_9] : memref<9x64x64xbf16, #tpu.memory_space<vmem>>, vector<1x64x64xbf16>
    %12 = vector.shape_cast %11 : vector<1x64x64xbf16> to vector<64x64xbf16>
    %13 = arith.truncf %10 : vector<64x512xf32> to vector<64x512xbf16>
    %cst_10 = arith.constant dense<0.000000e+00> : vector<64x512xf32>
    %14 = tpu.matmul %12, %13, %cst_10 {dimension_numbers = #tpu.dot_dimension_numbers<[1], [0], [0], [1], [0, 0, 1, 1], [], []>} : vector<64x64xbf16>, vector<64x512xbf16>, vector<64x512xf32> -> vector<64x512xf32>
    %c1 = arith.constant 1 : index
    %c0_11 = arith.constant 0 : index
    %c0_12 = arith.constant 0 : index
    %15 = vector.load %arg4[%c1, %c0_11, %c0_12] : memref<10x64x1xf32, #tpu.memory_space<vmem>>, vector<1x64x1xf32>
    %16 = vector.shape_cast %15 : vector<1x64x1xf32> to vector<64x1xf32>
    %17 = vector.broadcast %16 : vector<64x1xf32> to vector<64x512xf32>
    %18 = arith.addf %14, %17 : vector<64x512xf32>
    %cst_13 = arith.constant 0.00999999977 : f32
    %19 = vector.broadcast %cst_13 : f32 to vector<64x512xf32>
    %20 = arith.mulf %19, %18 : vector<64x512xf32>
    %21 = arith.maximumf %18, %20 : vector<64x512xf32>
    %c1_14 = arith.constant 1 : index
    %c0_15 = arith.constant 0 : index
    %c0_16 = arith.constant 0 : index
    %22 = vector.load %arg3[%c1_14, %c0_15, %c0_16] : memref<9x64x64xbf16, #tpu.memory_space<vmem>>, vector<1x64x64xbf16>
    %23 = vector.shape_cast %22 : vector<1x64x64xbf16> to vector<64x64xbf16>
    %24 = arith.truncf %21 : vector<64x512xf32> to vector<64x512xbf16>
    %cst_17 = arith.constant dense<0.000000e+00> : vector<64x512xf32>
    %25 = tpu.matmul %23, %24, %cst_17 {dimension_numbers = #tpu.dot_dimension_numbers<[1], [0], [0], [1], [0, 0, 1, 1], [], []>} : vector<64x64xbf16>, vector<64x512xbf16>, vector<64x512xf32> -> vector<64x512xf32>
    %c2 = arith.constant 2 : index
    %c0_18 = arith.constant 0 : index
    %c0_19 = arith.constant 0 : index
    %26 = vector.load %arg4[%c2, %c0_18, %c0_19] : memref<10x64x1xf32, #tpu.memory_space<vmem>>, vector<1x64x1xf32>
    %27 = vector.shape_cast %26 : vector<1x64x1xf32> to vector<64x1xf32>
    %28 = vector.broadcast %27 : vector<64x1xf32> to vector<64x512xf32>
    %29 = arith.addf %25, %28 : vector<64x512xf32>
    %cst_20 = arith.constant 0.00999999977 : f32
    %30 = vector.broadcast %cst_20 : f32 to vector<64x512xf32>
    %31 = arith.mulf %30, %29 : vector<64x512xf32>
    %32 = arith.maximumf %29, %31 : vector<64x512xf32>
    %c2_21 = arith.constant 2 : index
    %c0_22 = arith.constant 0 : index
    %c0_23 = arith.constant 0 : index
    %33 = vector.load %arg3[%c2_21, %c0_22, %c0_23] : memref<9x64x64xbf16, #tpu.memory_space<vmem>>, vector<1x64x64xbf16>
    %34 = vector.shape_cast %33 : vector<1x64x64xbf16> to vector<64x64xbf16>
    %35 = arith.truncf %32 : vector<64x512xf32> to vector<64x512xbf16>
    %cst_24 = arith.constant dense<0.000000e+00> : vector<64x512xf32>
    %36 = tpu.matmul %34, %35, %cst_24 {dimension_numbers = #tpu.dot_dimension_numbers<[1], [0], [0], [1], [0, 0, 1, 1], [], []>} : vector<64x64xbf16>, vector<64x512xbf16>, vector<64x512xf32> -> vector<64x512xf32>
    %c3 = arith.constant 3 : index
    %c0_25 = arith.constant 0 : index
    %c0_26 = arith.constant 0 : index
    %37 = vector.load %arg4[%c3, %c0_25, %c0_26] : memref<10x64x1xf32, #tpu.memory_space<vmem>>, vector<1x64x1xf32>
    %38 = vector.shape_cast %37 : vector<1x64x1xf32> to vector<64x1xf32>
    %39 = vector.broadcast %38 : vector<64x1xf32> to vector<64x512xf32>
    %40 = arith.addf %36, %39 : vector<64x512xf32>
    %cst_27 = arith.constant 0.00999999977 : f32
    %41 = vector.broadcast %cst_27 : f32 to vector<64x512xf32>
    %42 = arith.mulf %41, %40 : vector<64x512xf32>
    %43 = arith.maximumf %40, %42 : vector<64x512xf32>
    %c3_28 = arith.constant 3 : index
    %c0_29 = arith.constant 0 : index
    %c0_30 = arith.constant 0 : index
    %44 = vector.load %arg3[%c3_28, %c0_29, %c0_30] : memref<9x64x64xbf16, #tpu.memory_space<vmem>>, vector<1x64x64xbf16>
    %45 = vector.shape_cast %44 : vector<1x64x64xbf16> to vector<64x64xbf16>
    %46 = arith.truncf %43 : vector<64x512xf32> to vector<64x512xbf16>
    %cst_31 = arith.constant dense<0.000000e+00> : vector<64x512xf32>
    %47 = tpu.matmul %45, %46, %cst_31 {dimension_numbers = #tpu.dot_dimension_numbers<[1], [0], [0], [1], [0, 0, 1, 1], [], []>} : vector<64x64xbf16>, vector<64x512xbf16>, vector<64x512xf32> -> vector<64x512xf32>
    %c4 = arith.constant 4 : index
    %c0_32 = arith.constant 0 : index
    %c0_33 = arith.constant 0 : index
    %48 = vector.load %arg4[%c4, %c0_32, %c0_33] : memref<10x64x1xf32, #tpu.memory_space<vmem>>, vector<1x64x1xf32>
    %49 = vector.shape_cast %48 : vector<1x64x1xf32> to vector<64x1xf32>
    %50 = vector.broadcast %49 : vector<64x1xf32> to vector<64x512xf32>
    %51 = arith.addf %47, %50 : vector<64x512xf32>
    %c4_34 = arith.constant 4 : index
    %c0_35 = arith.constant 0 : index
    %c0_36 = arith.constant 0 : index
    %52 = vector.load %arg3[%c4_34, %c0_35, %c0_36] : memref<9x64x64xbf16, #tpu.memory_space<vmem>>, vector<1x64x64xbf16>
    %53 = vector.shape_cast %52 : vector<1x64x64xbf16> to vector<64x64xbf16>
    %54 = arith.truncf %51 : vector<64x512xf32> to vector<64x512xbf16>
    %cst_37 = arith.constant dense<0.000000e+00> : vector<64x512xf32>
    %55 = tpu.matmul %53, %54, %cst_37 {dimension_numbers = #tpu.dot_dimension_numbers<[1], [0], [0], [1], [0, 0, 1, 1], [], []>} : vector<64x64xbf16>, vector<64x512xbf16>, vector<64x512xf32> -> vector<64x512xf32>
    %c5 = arith.constant 5 : index
    %c0_38 = arith.constant 0 : index
    %c0_39 = arith.constant 0 : index
    %56 = vector.load %arg4[%c5, %c0_38, %c0_39] : memref<10x64x1xf32, #tpu.memory_space<vmem>>, vector<1x64x1xf32>
    %57 = vector.shape_cast %56 : vector<1x64x1xf32> to vector<64x1xf32>
    %58 = vector.broadcast %57 : vector<64x1xf32> to vector<64x512xf32>
    %59 = arith.addf %55, %58 : vector<64x512xf32>
    %cst_40 = arith.constant 0.00999999977 : f32
    %60 = vector.broadcast %cst_40 : f32 to vector<64x512xf32>
    %61 = arith.mulf %60, %59 : vector<64x512xf32>
    %62 = arith.maximumf %59, %61 : vector<64x512xf32>
    %c5_41 = arith.constant 5 : index
    %c0_42 = arith.constant 0 : index
    %c0_43 = arith.constant 0 : index
    %63 = vector.load %arg3[%c5_41, %c0_42, %c0_43] : memref<9x64x64xbf16, #tpu.memory_space<vmem>>, vector<1x64x64xbf16>
    %64 = vector.shape_cast %63 : vector<1x64x64xbf16> to vector<64x64xbf16>
    %65 = arith.truncf %62 : vector<64x512xf32> to vector<64x512xbf16>
    %cst_44 = arith.constant dense<0.000000e+00> : vector<64x512xf32>
    %66 = tpu.matmul %64, %65, %cst_44 {dimension_numbers = #tpu.dot_dimension_numbers<[1], [0], [0], [1], [0, 0, 1, 1], [], []>} : vector<64x64xbf16>, vector<64x512xbf16>, vector<64x512xf32> -> vector<64x512xf32>
    %c6 = arith.constant 6 : index
    %c0_45 = arith.constant 0 : index
    %c0_46 = arith.constant 0 : index
    %67 = vector.load %arg4[%c6, %c0_45, %c0_46] : memref<10x64x1xf32, #tpu.memory_space<vmem>>, vector<1x64x1xf32>
    %68 = vector.shape_cast %67 : vector<1x64x1xf32> to vector<64x1xf32>
    %69 = vector.broadcast %68 : vector<64x1xf32> to vector<64x512xf32>
    %70 = arith.addf %66, %69 : vector<64x512xf32>
    %cst_47 = arith.constant 0.00999999977 : f32
    %71 = vector.broadcast %cst_47 : f32 to vector<64x512xf32>
    %72 = arith.mulf %71, %70 : vector<64x512xf32>
    %73 = arith.maximumf %70, %72 : vector<64x512xf32>
    %c6_48 = arith.constant 6 : index
    %c0_49 = arith.constant 0 : index
    %c0_50 = arith.constant 0 : index
    %74 = vector.load %arg3[%c6_48, %c0_49, %c0_50] : memref<9x64x64xbf16, #tpu.memory_space<vmem>>, vector<1x64x64xbf16>
    %75 = vector.shape_cast %74 : vector<1x64x64xbf16> to vector<64x64xbf16>
    %76 = arith.truncf %73 : vector<64x512xf32> to vector<64x512xbf16>
    %cst_51 = arith.constant dense<0.000000e+00> : vector<64x512xf32>
    %77 = tpu.matmul %75, %76, %cst_51 {dimension_numbers = #tpu.dot_dimension_numbers<[1], [0], [0], [1], [0, 0, 1, 1], [], []>} : vector<64x64xbf16>, vector<64x512xbf16>, vector<64x512xf32> -> vector<64x512xf32>
    %c7 = arith.constant 7 : index
    %c0_52 = arith.constant 0 : index
    %c0_53 = arith.constant 0 : index
    %78 = vector.load %arg4[%c7, %c0_52, %c0_53] : memref<10x64x1xf32, #tpu.memory_space<vmem>>, vector<1x64x1xf32>
    %79 = vector.shape_cast %78 : vector<1x64x1xf32> to vector<64x1xf32>
    %80 = vector.broadcast %79 : vector<64x1xf32> to vector<64x512xf32>
    %81 = arith.addf %77, %80 : vector<64x512xf32>
    %cst_54 = arith.constant 0.00999999977 : f32
    %82 = vector.broadcast %cst_54 : f32 to vector<64x512xf32>
    %83 = arith.mulf %82, %81 : vector<64x512xf32>
    %84 = arith.maximumf %81, %83 : vector<64x512xf32>
    %c7_55 = arith.constant 7 : index
    %c0_56 = arith.constant 0 : index
    %c0_57 = arith.constant 0 : index
    %85 = vector.load %arg3[%c7_55, %c0_56, %c0_57] : memref<9x64x64xbf16, #tpu.memory_space<vmem>>, vector<1x64x64xbf16>
    %86 = vector.shape_cast %85 : vector<1x64x64xbf16> to vector<64x64xbf16>
    %87 = arith.truncf %84 : vector<64x512xf32> to vector<64x512xbf16>
    %cst_58 = arith.constant dense<0.000000e+00> : vector<64x512xf32>
    %88 = tpu.matmul %86, %87, %cst_58 {dimension_numbers = #tpu.dot_dimension_numbers<[1], [0], [0], [1], [0, 0, 1, 1], [], []>} : vector<64x64xbf16>, vector<64x512xbf16>, vector<64x512xf32> -> vector<64x512xf32>
    %c8 = arith.constant 8 : index
    %c0_59 = arith.constant 0 : index
    %c0_60 = arith.constant 0 : index
    %89 = vector.load %arg4[%c8, %c0_59, %c0_60] : memref<10x64x1xf32, #tpu.memory_space<vmem>>, vector<1x64x1xf32>
    %90 = vector.shape_cast %89 : vector<1x64x1xf32> to vector<64x1xf32>
    %91 = vector.broadcast %90 : vector<64x1xf32> to vector<64x512xf32>
    %92 = arith.addf %88, %91 : vector<64x512xf32>
    %cst_61 = arith.constant 0.00999999977 : f32
    %93 = vector.broadcast %cst_61 : f32 to vector<64x512xf32>
    %94 = arith.mulf %93, %92 : vector<64x512xf32>
    %95 = arith.maximumf %92, %94 : vector<64x512xf32>
    %c8_62 = arith.constant 8 : index
    %c0_63 = arith.constant 0 : index
    %c0_64 = arith.constant 0 : index
    %96 = vector.load %arg3[%c8_62, %c0_63, %c0_64] : memref<9x64x64xbf16, #tpu.memory_space<vmem>>, vector<1x64x64xbf16>
    %97 = vector.shape_cast %96 : vector<1x64x64xbf16> to vector<64x64xbf16>
    %98 = arith.truncf %95 : vector<64x512xf32> to vector<64x512xbf16>
    %cst_65 = arith.constant dense<0.000000e+00> : vector<64x512xf32>
    %99 = tpu.matmul %97, %98, %cst_65 {dimension_numbers = #tpu.dot_dimension_numbers<[1], [0], [0], [1], [0, 0, 1, 1], [], []>} : vector<64x64xbf16>, vector<64x512xbf16>, vector<64x512xf32> -> vector<64x512xf32>
    %c9 = arith.constant 9 : index
    %c0_66 = arith.constant 0 : index
    %c0_67 = arith.constant 0 : index
    %100 = vector.load %arg4[%c9, %c0_66, %c0_67] : memref<10x64x1xf32, #tpu.memory_space<vmem>>, vector<1x64x1xf32>
    %101 = vector.shape_cast %100 : vector<1x64x1xf32> to vector<64x1xf32>
    %102 = vector.broadcast %101 : vector<64x1xf32> to vector<64x512xf32>
    %103 = arith.addf %99, %102 : vector<64x512xf32>
    %104 = vector.extract_strided_slice %103 {offsets = [0, 0], sizes = [32, 512], strides = [1, 1]} : vector<64x512xf32> to vector<32x512xf32>
    %c0_68 = arith.constant 0 : index
    %c0_69 = arith.constant 0 : index
    %105 = vector.load %arg5[%c0_68, %c0_69] : memref<32x512xf32, #tpu.memory_space<vmem>>, vector<32x512xf32>
    tpu.vector_store %arg5[%c0_68, %c0_69], %104 {strides = array<i32>} : memref<32x512xf32, #tpu.memory_space<vmem>>, vector<32x512xf32>,
    return
  }
  func.func @transform_0(%arg0: i32) -> (i32, i32) {
    %c0_i32 = arith.constant 0 : i32
    %c0_i32_0 = arith.constant 0 : i32
    return %c0_i32, %arg0 : i32, i32
  }
  func.func @transform_1(%arg0: i32) -> (i32, i32) {
    %c0_i32 = arith.constant 0 : i32
    %c0_i32_0 = arith.constant 0 : i32
    %c0_i32_1 = arith.constant 0 : i32
    return %c0_i32, %c0_i32_0 : i32, i32
  }
  func.func @transform_2(%arg0: i32) -> (i32, i32, i32) {
    %c0_i32 = arith.constant 0 : i32
    %c0_i32_0 = arith.constant 0 : i32
    %c0_i32_1 = arith.constant 0 : i32
    %c0_i32_2 = arith.constant 0 : i32
    return %c0_i32, %c0_i32_0, %c0_i32_1 : i32, i32, i32
  }
  func.func @transform_3(%arg0: i32) -> (i32, i32, i32) {
    %c0_i32 = arith.constant 0 : i32
    %c0_i32_0 = arith.constant 0 : i32
    %c0_i32_1 = arith.constant 0 : i32
    %c0_i32_2 = arith.constant 0 : i32
    return %c0_i32, %c0_i32_0, %c0_i32_1 : i32, i32, i32
  }
  func.func @transform_4(%arg0: i32) -> (i32, i32) {
    %c0_i32 = arith.constant 0 : i32
    %c0_i32_0 = arith.constant 0 : i32
    return %c0_i32, %arg0 : i32, i32
  }
}

</mosaic_0001>

<llo_original>
// kernel: autoencoder_forward.1
$region0: #{autoencoder_forward.1}
  #allocation0 [shape = 'u32[]', space=smem, size = 0x4, offset = 0x4, fixed_abs, tag = 'smem constant byte address 0x4 - core index']
  #allocation1 [shape = 'u32[72,128]{1,0:T(1,128)}', space=vmem, size = 0x9000, scoped, tag = 'internal scratch']
  %s0 = inlined_call_operand.vmem [shape: f32[32,1024], index: 0, kind: input, shape index: {}]
  %s1 = inlined_call_operand.vmem [shape: bf16[64,32], index: 1, kind: input, shape index: {}]
  %s2 = inlined_call_operand.vmem [shape: bf16[9,64,64], index: 2, kind: input, shape index: {}]
  %s3 = inlined_call_operand.vmem [shape: f32[10,64,1], index: 3, kind: input, shape index: {}]
  %s4 = inlined_call_operand.vmem [shape: f32[32,1024], index: 4, kind: output, shape index: {}]
  %s5 = sld [smem:[#allocation0]]
  $region91: #{autoencoder_forward.1} parent=0
    _
  %s7 = ssub.s32 1, %s5
  %s8 = scalar_select 0, %s7, %s5
  $region1: #{autoencoder_forward.1} parent=0
    #allocation2 [shape = 'u8[131072]{0}', space=vmem, size = 0x20000, scoped, tag = 'input window, operand 0']
    #allocation3 [shape = 'u8[131072]{0}', space=vmem, size = 0x20000, scoped, tag = 'output window, operand 0']
    loop: start=0, step=1, limit=4
    $region2: #{autoencoder_forward.1} parent=1 // loop_pre_header
      _
    $region3: #{autoencoder_forward.1} parent=1 // loop_header
      %s10 = sphi 0, %s14
      %p11 = scmp.ge.s32.totalorder %s10, 4
      %s20 = sphi 0, %s22
      %s23 = sphi 0, %s20
      %s24 = sphi 0, %s23
      %s40 = sphi 0, %s24
      %s44 = sphi 0, %s44
      %s46 = sphi 0, %s44
      %s47 = sphi 0, %s46
      %s61 = sphi 0, %s47
      %s65 = sphi 0, %s65
      %s67 = sphi 0, %s65
      %s68 = sphi 0, %s67
      %s82 = sphi 0, %s68
      %s86 = sphi 0, %s86
      %s88 = sphi 0, %s86
      %s89 = sphi 0, %s88
      %s103 = sphi 0, %s89
      %s109 = sphi 0, %s111
      %s112 = sphi 0, %s109
      %s113 = sphi 0, %s112
      %s129 = sphi 0, %s113
    $region4: #{autoencoder_forward.1} parent=1 // loop_header_branch
      %13 = sbr.rel (%p11) target = $region8
    $region5: #{autoencoder_forward.1} parent=1 // loop_body
      %s15 = ssub.s32 %s10, 1
      %s16 = ssub.s32 %s10, 2
      %s17 = sadd.s32 %s10, 1
      %s18 = ssub.s32 %s10, %s17
      %p19 = scmp.eq.s32.totalorder %s18, 0
      %s21 = sadd.s32 %s20, 1
      %s22 = scalar_select %p19, %s20, %s21
      %p25 = pneg %p19
      %p26 = scmp.eq.s32.totalorder %s10, 1
      %p27 = por %p25, %p26
      %p28 = scmp.ne.s32.totalorder %s20, %s23
      %p29 = scmp.eq.s32.totalorder %s10, 0
      %p30 = por %p28, %p29
      %p31 = scmp.ne.s32.totalorder %s20, %s23
      %p32 = scmp.eq.s32.totalorder %s15, 1
      %p33 = por %p31, %p32
      %p34 = scmp.ne.s32.totalorder %s23, %s24
      %p35 = scmp.eq.s32.totalorder %s15, 0
      %p36 = por %p34, %p35
      %p37 = scmp.ne.s32.totalorder %s23, %s24
      %p38 = scmp.eq.s32.totalorder %s16, 1
      %p39 = por %p37, %p38
      %p41 = scmp.ne.s32.totalorder %s24, %s40
      %p42 = scmp.eq.s32.totalorder %s16, 0
      %p43 = por %p41, %p42
      %s45 = sadd.s32 %s44, 1
      %p48 = scmp.eq.s32.totalorder %s10, 1
      %p49 = scmp.ne.s32.totalorder %s44, %s46
      %p50 = scmp.eq.s32.totalorder %s10, 0
      %p51 = por %p49, %p50
      %p52 = scmp.ne.s32.totalorder %s44, %s46
      %p53 = scmp.eq.s32.totalorder %s15, 1
      %p54 = por %p52, %p53
      %p55 = scmp.ne.s32.totalorder %s46, %s47
      %p56 = scmp.eq.s32.totalorder %s15, 0
      %p57 = por %p55, %p56
      %p58 = scmp.ne.s32.totalorder %s46, %s47
      %p59 = scmp.eq.s32.totalorder %s16, 1
      %p60 = por %p58, %p59
      %p62 = scmp.ne.s32.totalorder %s47, %s61
      %p63 = scmp.eq.s32.totalorder %s16, 0
      %p64 = por %p62, %p63
      %s66 = sadd.s32 %s65, 1
      %p69 = scmp.eq.s32.totalorder %s10, 1
      %p70 = scmp.ne.s32.totalorder %s65, %s67
      %p71 = scmp.eq.s32.totalorder %s10, 0
      %p72 = por %p70, %p71
      %p73 = scmp.ne.s32.totalorder %s65, %s67
      %p74 = scmp.eq.s32.totalorder %s15, 1
      %p75 = por %p73, %p74
      %p76 = scmp.ne.s32.totalorder %s67, %s68
      %p77 = scmp.eq.s32.totalorder %s15, 0
      %p78 = por %p76, %p77
      %p79 = scmp.ne.s32.totalorder %s67, %s68
      %p80 = scmp.eq.s32.totalorder %s16, 1
      %p81 = por %p79, %p80
      %p83 = scmp.ne.s32.totalorder %s68, %s82
      %p84 = scmp.eq.s32.totalorder %s16, 0
      %p85 = por %p83, %p84
      %s87 = sadd.s32 %s86, 1
      %p90 = scmp.eq.s32.totalorder %s10, 1
      %p91 = scmp.ne.s32.totalorder %s86, %s88
      %p92 = scmp.eq.s32.totalorder %s10, 0
      %p93 = por %p91, %p92
      %p94 = scmp.ne.s32.totalorder %s86, %s88
      %p95 = scmp.eq.s32.totalorder %s15, 1
      %p96 = por %p94, %p95
      %p97 = scmp.ne.s32.totalorder %s88, %s89
      %p98 = scmp.eq.s32.totalorder %s15, 0
      %p99 = por %p97, %p98
      %p100 = scmp.ne.s32.totalorder %s88, %s89
      %p101 = scmp.eq.s32.totalorder %s16, 1
      %p102 = por %p100, %p101
      %p104 = scmp.ne.s32.totalorder %s89, %s103
      %p105 = scmp.eq.s32.totalorder %s16, 0
      %p106 = por %p104, %p105
      %s107 = ssub.s32 %s10, %s17
      %p108 = scmp.eq.s32.totalorder %s107, 0
      %s110 = sadd.s32 %s109, 1
      %s111 = scalar_select %p108, %s109, %s110
      %p114 = pneg %p108
      %p115 = scmp.eq.s32.totalorder %s10, 1
      %p116 = por %p114, %p115
      %p117 = scmp.ne.s32.totalorder %s109, %s112
      %p118 = scmp.eq.s32.totalorder %s10, 0
      %p119 = por %p117, %p118
      %p120 = scmp.ne.s32.totalorder %s109, %s112
      %p121 = scmp.eq.s32.totalorder %s15, 1
      %p122 = por %p120, %p121
      %p123 = scmp.ne.s32.totalorder %s112, %s113
      %p124 = scmp.eq.s32.totalorder %s15, 0
      %p125 = por %p123, %p124
      %p126 = scmp.ne.s32.totalorder %s112, %s113
      %p127 = scmp.eq.s32.totalorder %s16, 1
      %p128 = por %p126, %p127
      %p130 = scmp.ne.s32.totalorder %s113, %s129
      %p131 = scmp.eq.s32.totalorder %s16, 0
      %p132 = por %p130, %p131
      %p133 = scmp.le.s32.totalorder 1, %s10
      %p134 = scmp.lt.s32.totalorder %s10, 3
      %p135 = pnand %p133, %p134
      %p136 = pneg %p135
      // Predicated region
      $region9: #{autoencoder_forward.1} parent=5 // pred_check
        _
      $region10: #{autoencoder_forward.1} parent=5 // pred_check_branch
        %138 = sbr.rel (%p135) target = $region12
      $region11: #{autoencoder_forward.1} parent=5 // pred_region
        %s139 = ssub.s32 %s10, 1
        // Predicated region
        $region13: #{autoencoder_forward.1} parent=11 // pred_check
          %p140 = pneg %p57
        $region14: #{autoencoder_forward.1} parent=11 // pred_check_branch
          %142 = sbr.rel (%p140) target = $region16
        $region15: #{autoencoder_forward.1} parent=11 // pred_region
          _
        $region16: #{autoencoder_forward.1} parent=11 // pred_fallthru
          _
        // Predicated region
        $region17: #{autoencoder_forward.1} parent=11 // pred_check
          %p143 = pneg %p78
        $region18: #{autoencoder_forward.1} parent=11 // pred_check_branch
          %145 = sbr.rel (%p143) target = $region20
        $region19: #{autoencoder_forward.1} parent=11 // pred_region
          _
        $region20: #{autoencoder_forward.1} parent=11 // pred_fallthru
          _
        // Predicated region
        $region21: #{autoencoder_forward.1} parent=11 // pred_check
          %p146 = pneg %p99
        $region22: #{autoencoder_forward.1} parent=11 // pred_check_branch
          %148 = sbr.rel (%p146) target = $region24
        $region23: #{autoencoder_forward.1} parent=11 // pred_region
          _
        $region24: #{autoencoder_forward.1} parent=11 // pred_fallthru
          _
      $region12: #{autoencoder_forward.1} parent=5 // pred_fallthru
        _
      %p149 = scmp.lt.s32.totalorder %s10, 2
      // Predicated region
      $region25: #{autoencoder_forward.1} parent=5 // pred_check
        %p150 = pneg %p149
      $region26: #{autoencoder_forward.1} parent=5 // pred_check_branch
        %152 = sbr.rel (%p150) target = $region28
      $region27: #{autoencoder_forward.1} parent=5 // pred_region
        // Predicated region
        $region29: #{autoencoder_forward.1} parent=27 // pred_check
          %p153 = pneg %p30
        $region30: #{autoencoder_forward.1} parent=27 // pred_check_branch
          %155 = sbr.rel (%p153) target = $region32
        $region31: #{autoencoder_forward.1} parent=27 // pred_region
          %s156 = sand.u32 %s20, 1
          %s157 = sand.u32 %s20, 1
          %s158 = smul.addr %s157, 128
          %s159 = scalar_lea.vmem [#allocation2], %s158
          %s160 = smul.u32 4, %s10
          %s161 = smul.addr %s160, 8
          %s162 = scalar_lea.vmem %s0, %s161
          // Predicated region
          $region33: #{autoencoder_forward.1} parent=31 // pred_check
            _
          $region34: #{autoencoder_forward.1} parent=31 // pred_check_branch
            %164 = sbr.rel (0) target = $region36
          $region35: #{autoencoder_forward.1} parent=31 // pred_region
            // Predicated region
            $region37: #{autoencoder_forward.1} parent=35 // pred_check
              _
            $region38: #{autoencoder_forward.1} parent=35 // pred_check_branch
              %166 = sbr.rel (0) target = $region40
            $region39: #{autoencoder_forward.1} parent=35 // pred_region
              loop: start=0, step=1, limit=1
              $region41: #{autoencoder_forward.1} parent=39 // loop_pre_header
                _
              $region42: #{autoencoder_forward.1} parent=39 // loop_header
                %s168 = sphi 0, %s172
                %p169 = scmp.ge.s32.totalorder %s168, 1
                %s173 = sphi %s162, %s162
                %s174 = sphi %s159, %s159
              $region43: #{autoencoder_forward.1} parent=39 // loop_header_branch
                %171 = sbr.rel (%p169) target = $region47
              $region44: #{autoencoder_forward.1} parent=39 // loop_body
                %v175 = vld [vmem:[%s173] sm:$0xff]
                %176 = vst [vmem:[%s174] sm:$0xff] %v175
                %v177 = vld [vmem:[%s173 + $0x8] sm:$0xff]
                %178 = vst [vmem:[%s174 + $0x8] sm:$0xff] %v177
                %v179 = vld [vmem:[%s173 + $0x10] sm:$0xff]
                %180 = vst [vmem:[%s174 + $0x10] sm:$0xff] %v179
                %v181 = vld [vmem:[%s173 + $0x18] sm:$0xff]
                %182 = vst [vmem:[%s174 + $0x18] sm:$0xff] %v181
                %v183 = vld [vmem:[%s173 + $0x40] sm:$0xff]
                %184 = vst [vmem:[%s174 + $0x20] sm:$0xff] %v183
                %v185 = vld [vmem:[%s173 + $0x48] sm:$0xff]
                %186 = vst [vmem:[%s174 + $0x28] sm:$0xff] %v185
                %v187 = vld [vmem:[%s173 + $0x50] sm:$0xff]
                %188 = vst [vmem:[%s174 + $0x30] sm:$0xff] %v187
                %v189 = vld [vmem:[%s173 + $0x58] sm:$0xff]
                %190 = vst [vmem:[%s174 + $0x38] sm:$0xff] %v189
                %v191 = vld [vmem:[%s173 + $0x80] sm:$0xff]
                %192 = vst [vmem:[%s174 + $0x40] sm:$0xff] %v191
                %v193 = vld [vmem:[%s173 + $0x88] sm:$0xff]
                %194 = vst [vmem:[%s174 + $0x48] sm:$0xff] %v193
                %v195 = vld [vmem:[%s173 + $0x90] sm:$0xff]
                %196 = vst [vmem:[%s174 + $0x50] sm:$0xff] %v195
                %v197 = vld [vmem:[%s173 + $0x98] sm:$0xff]
                %198 = vst [vmem:[%s174 + $0x58] sm:$0xff] %v197
                %v199 = vld [vmem:[%s173 + $0xc0] sm:$0xff]
                %200 = vst [vmem:[%s174 + $0x60] sm:$0xff] %v199
                %v201 = vld [vmem:[%s173 + $0xc8] sm:$0xff]
                %202 = vst [vmem:[%s174 + $0x68] sm:$0xff] %v201
                %v203 = vld [vmem:[%s173 + $0xd0] sm:$0xff]
                %204 = vst [vmem:[%s174 + $0x70] sm:$0xff] %v203
                %v205 = vld [vmem:[%s173 + $0xd8] sm:$0xff]
                %206 = vst [vmem:[%s174 + $0x78] sm:$0xff] %v205
              $region45: #{autoencoder_forward.1} parent=39 // loop_footer
                %s172 = sadd.s32 1, %s168
              $region46: #{autoencoder_forward.1} parent=39 // loop_footer_branch
                %167 = sbr.rel target = $region42
              $region47: #{autoencoder_forward.1} parent=39 // loop_exit
                _
            $region40: #{autoencoder_forward.1} parent=35 // pred_fallthru
              _
            // Predicated region
            $region48: #{autoencoder_forward.1} parent=35 // pred_check
              _
            $region49: #{autoencoder_forward.1} parent=35 // pred_check_branch
              %208 = sbr.rel target = $region51
            $region50: #{autoencoder_forward.1} parent=35 // pred_region
              _
            $region51: #{autoencoder_forward.1} parent=35 // pred_fallthru
              _
          $region36: #{autoencoder_forward.1} parent=31 // pred_fallthru
            _
          %209 = vnop
        $region32: #{autoencoder_forward.1} parent=27 // pred_fallthru
          _
      $region28: #{autoencoder_forward.1} parent=5 // pred_fallthru
        _
      %p210 = scmp.le.s32.totalorder 1, %s10
      %p211 = scmp.lt.s32.totalorder %s10, 3
      %p212 = pnand %p210, %p211
      %p213 = pneg %p212
      // Predicated region
      $region52: #{autoencoder_forward.1} parent=5 // pred_check
        _
      $region53: #{autoencoder_forward.1} parent=5 // pred_check_branch
        %215 = sbr.rel (%p212) target = $region55
      $region54: #{autoencoder_forward.1} parent=5 // pred_region
        %s216 = ssub.s32 %s10, 1
        %s217 = sand.u32 %s23, 1
        %s218 = sand.u32 %s23, 1
        %s219 = smul.addr %s218, 128
        %s220 = scalar_lea.vmem [#allocation2], %s219
        // Predicated region
        $region56: #{autoencoder_forward.1} parent=54 // pred_check
          %p221 = pneg %p36
        $region57: #{autoencoder_forward.1} parent=54 // pred_check_branch
          %223 = sbr.rel (%p221) target = $region59
        $region58: #{autoencoder_forward.1} parent=54 // pred_region
          _
        $region59: #{autoencoder_forward.1} parent=54 // pred_fallthru
          _
        %s224 = sand.u32 %s23, 1
        %s225 = sand.u32 %s23, 1
        %s226 = smul.addr %s225, 128
        %s227 = scalar_lea.vmem [#allocation2], %s226
        %p228 = pneg %p36
        %p229 = pneg %p33
        %p230 = pneg %p57
        %p231 = pneg %p54
        %p232 = pneg %p78
        %p233 = pneg %p75
        %p234 = pneg %p99
        %p235 = pneg %p96
        %p236 = pneg %p125
        %p237 = pneg %p122
        %s238 = sand.u32 %s112, 1
        %s239 = sand.u32 %s112, 1
        %s240 = smul.addr %s239, 128
        %s241 = scalar_lea.vmem [#allocation3], %s240
        %s242 = smul.u32 4, %s15
        %s243 = smul.u32 4, %s15
        %v245 = vld [vmem:[%s1] sm:$0xf]
        %v246 = vld [vmem:[%s1 + $0x4] sm:$0xf]
        %v247 = vld [vmem:[%s1 + $0x8] sm:$0xf]
        %v248 = vld [vmem:[%s1 + $0xc] sm:$0xf]
        %v249 = vld [vmem:[%s1 + $0x10] sm:$0xf]
        %v250 = vld [vmem:[%s1 + $0x14] sm:$0xf]
        %v251 = vld [vmem:[%s1 + $0x18] sm:$0xf]
        %v252 = vld [vmem:[%s1 + $0x1c] sm:$0xf]
        %v253 = vld [vmem:[%s220] sm:$0xff]
        %v254 = vld [vmem:[%s220 + $0x8] sm:$0xff]
        %v255 = vld [vmem:[%s220 + $0x10] sm:$0xff]
        %v256 = vld [vmem:[%s220 + $0x18] sm:$0xff]
        %v257 = vld [vmem:[%s220 + $0x20] sm:$0xff]
        %v258 = vld [vmem:[%s220 + $0x28] sm:$0xff]
        %v259 = vld [vmem:[%s220 + $0x30] sm:$0xff]
        %v260 = vld [vmem:[%s220 + $0x38] sm:$0xff]
        %v261 = vld [vmem:[%s220 + $0x40] sm:$0xff]
        %v262 = vld [vmem:[%s220 + $0x48] sm:$0xff]
        %v263 = vld [vmem:[%s220 + $0x50] sm:$0xff]
        %v264 = vld [vmem:[%s220 + $0x58] sm:$0xff]
        %v265 = vld [vmem:[%s220 + $0x60] sm:$0xff]
        %v266 = vld [vmem:[%s220 + $0x68] sm:$0xff]
        %v267 = vld [vmem:[%s220 + $0x70] sm:$0xff]
        %v268 = vld [vmem:[%s220 + $0x78] sm:$0xff]
        %v269 = vpack.c.bf16 %v257, %v253
        %v270 = vpack.c.bf16 %v258, %v254
        %v271 = vpack.c.bf16 %v259, %v255
        %v272 = vpack.c.bf16 %v260, %v256
        %v273 = vpack.c.bf16 %v265, %v261
        %v274 = vpack.c.bf16 %v266, %v262
        %v275 = vpack.c.bf16 %v267, %v263
        %v276 = vpack.c.bf16 %v268, %v264
        %v277 = vld [vmem:[%s3] sm:$0xff]
        %v278 = vld [vmem:[%s3 + $0x8] sm:$0xff]
        %v279 = vld [vmem:[%s3 + $0x10] sm:$0xff]
        %v280 = vld [vmem:[%s3 + $0x18] sm:$0xff]
        %v281 = vld [vmem:[%s3 + $0x20] sm:$0xff]
        %v282 = vld [vmem:[%s3 + $0x28] sm:$0xff]
        %v283 = vld [vmem:[%s3 + $0x30] sm:$0xff]
        %v284 = vld [vmem:[%s3 + $0x38] sm:$0xff]
        %286 = vset.pattern.permute.xlu0 0
        %287 = vperm.xlu0 %286, %v277
        %v288 = vpop.permute.xlu0 %287
        %291 = vset.pattern.permute.xlu0 0
        %292 = vperm.xlu0 %291, %v278
        %v293 = vpop.permute.xlu0 %292
        %296 = vset.pattern.permute.xlu0 0
        %297 = vperm.xlu0 %296, %v279
        %v298 = vpop.permute.xlu0 %297
        %301 = vset.pattern.permute.xlu0 0
        %302 = vperm.xlu0 %301, %v280
        %v303 = vpop.permute.xlu0 %302
        %306 = vset.pattern.permute.xlu0 0
        %307 = vperm.xlu0 %306, %v281
        %v308 = vpop.permute.xlu0 %307
        %311 = vset.pattern.permute.xlu0 0
        %312 = vperm.xlu0 %311, %v282
        %v313 = vpop.permute.xlu0 %312
        %316 = vset.pattern.permute.xlu0 0
        %317 = vperm.xlu0 %316, %v283
        %v318 = vpop.permute.xlu0 %317
        %321 = vset.pattern.permute.xlu0 0
        %322 = vperm.xlu0 %321, %v284
        %v323 = vpop.permute.xlu0 %322
        %v333 = vunpack.c.l.b16 %v245
        %v334 = vunpack.c.l.b16 %v246
        %v335 = vunpack.c.l.b16 %v247
        %v336 = vunpack.c.l.b16 %v248
        %v337 = vunpack.c.l.b16 %v249
        %v338 = vunpack.c.l.b16 %v250
        %v339 = vunpack.c.l.b16 %v251
        %v340 = vunpack.c.l.b16 %v252
        %v341 = vpack.c.b16 %v334, %v333
        %v342 = vpack.c.b16 %v336, %v335
        %v343 = vpack.c.b16 %v338, %v337
        %v344 = vpack.c.b16 %v340, %v339
        %vm345 = vcmask 261120
        %v347 = vsel %vm345, %v341, 0
        %v350 = vsel %vm345, %v342, 0
        %v353 = vsel %vm345, %v343, 0
        %v356 = vsel %vm345, %v344, 0
        %358 = vmatpush.bf16.msra.mxu0 0
        %359 = vmatpush.bf16.msra.mxu0 0
        %360 = vmatpush.bf16.msra.mxu0 0
        %361 = vmatpush.bf16.msra.mxu0 0
        %362 = vmatpush.bf16.msra.mxu0 0
        %363 = vmatpush.bf16.msra.mxu0 0
        %364 = vmatpush.bf16.msra.mxu0 %v273
        %365 = vmatpush.bf16.msra.mxu0 %v269
        %366 = vmatmul.bf16.gmra.mxu0 %v347
        %v367 = vpop.f32.mrf.mxu0
        %v368 = vadd.f32 %v288, %v367
        %v369 = vpop.f32.mrf.mxu0
        %v370 = vadd.f32 %v293, %v369
        %371 = vmatmul.bf16.gmra.mxu0 %v350
        %v372 = vpop.f32.mrf.mxu0
        %v373 = vadd.f32 %v298, %v372
        %v374 = vpop.f32.mrf.mxu0
        %v375 = vadd.f32 %v303, %v374
        %376 = vmatmul.bf16.gmra.mxu0 %v353
        %v377 = vpop.f32.mrf.mxu0
        %v378 = vadd.f32 %v308, %v377
        %v379 = vpop.f32.mrf.mxu0
        %v380 = vadd.f32 %v313, %v379
        %381 = vmatmul.bf16.gmra.mxu0 %v356
        %v382 = vpop.f32.mrf.mxu0
        %v383 = vadd.f32 %v318, %v382
        %v384 = vpop.f32.mrf.mxu0
        %v385 = vadd.f32 %v323, %v384
        %386 = vdwg.mxu0
        %387 = vmatpush.bf16.msra.mxu0 0
        %388 = vmatpush.bf16.msra.mxu0 0
        %389 = vmatpush.bf16.msra.mxu0 0
        %390 = vmatpush.bf16.msra.mxu0 0
        %391 = vmatpush.bf16.msra.mxu0 0
        %392 = vmatpush.bf16.msra.mxu0 0
        %393 = vmatpush.bf16.msra.mxu0 %v274
        %394 = vmatpush.bf16.msra.mxu0 %v270
        %395 = vmatmul.bf16.gmra.mxu0 %v347
        %v396 = vpop.f32.mrf.mxu0
        %v397 = vadd.f32 %v288, %v396
        %v398 = vpop.f32.mrf.mxu0
        %v399 = vadd.f32 %v293, %v398
        %400 = vmatmul.bf16.gmra.mxu0 %v350
        %v401 = vpop.f32.mrf.mxu0
        %v402 = vadd.f32 %v298, %v401
        %v403 = vpop.f32.mrf.mxu0
        %v404 = vadd.f32 %v303, %v403
        %405 = vmatmul.bf16.gmra.mxu0 %v353
        %v406 = vpop.f32.mrf.mxu0
        %v407 = vadd.f32 %v308, %v406
        %v408 = vpop.f32.mrf.mxu0
        %v409 = vadd.f32 %v313, %v408
        %410 = vmatmul.bf16.gmra.mxu0 %v356
        %v411 = vpop.f32.mrf.mxu0
        %v412 = vadd.f32 %v318, %v411
        %v413 = vpop.f32.mrf.mxu0
        %v414 = vadd.f32 %v323, %v413
        %415 = vdwg.mxu0
        %416 = vmatpush.bf16.msra.mxu0 0
        %417 = vmatpush.bf16.msra.mxu0 0
        %418 = vmatpush.bf16.msra.mxu0 0
        %419 = vmatpush.bf16.msra.mxu0 0
        %420 = vmatpush.bf16.msra.mxu0 0
        %421 = vmatpush.bf16.msra.mxu0 0
        %422 = vmatpush.bf16.msra.mxu0 %v275
        %423 = vmatpush.bf16.msra.mxu0 %v271
        %424 = vmatmul.bf16.gmra.mxu0 %v347
        %v425 = vpop.f32.mrf.mxu0
        %v426 = vadd.f32 %v288, %v425
        %v427 = vpop.f32.mrf.mxu0
        %v428 = vadd.f32 %v293, %v427
        %429 = vmatmul.bf16.gmra.mxu0 %v350
        %v430 = vpop.f32.mrf.mxu0
        %v431 = vadd.f32 %v298, %v430
        %v432 = vpop.f32.mrf.mxu0
        %v433 = vadd.f32 %v303, %v432
        %434 = vmatmul.bf16.gmra.mxu0 %v353
        %v435 = vpop.f32.mrf.mxu0
        %v436 = vadd.f32 %v308, %v435
        %v437 = vpop.f32.mrf.mxu0
        %v438 = vadd.f32 %v313, %v437
        %439 = vmatmul.bf16.gmra.mxu0 %v356
        %v440 = vpop.f32.mrf.mxu0
        %v441 = vadd.f32 %v318, %v440
        %v442 = vpop.f32.mrf.mxu0
        %v443 = vadd.f32 %v323, %v442
        %444 = vdwg.mxu0
        %445 = vmatpush.bf16.msra.mxu0 0
        %446 = vmatpush.bf16.msra.mxu0 0
        %447 = vmatpush.bf16.msra.mxu0 0
        %448 = vmatpush.bf16.msra.mxu0 0
        %449 = vmatpush.bf16.msra.mxu0 0
        %450 = vmatpush.bf16.msra.mxu0 0
        %451 = vmatpush.bf16.msra.mxu0 %v276
        %452 = vmatpush.bf16.msra.mxu0 %v272
        %453 = vmatmul.bf16.gmra.mxu0 %v347
        %v454 = vpop.f32.mrf.mxu0
        %v455 = vadd.f32 %v288, %v454
        %v456 = vpop.f32.mrf.mxu0
        %v457 = vadd.f32 %v293, %v456
        %458 = vmatmul.bf16.gmra.mxu0 %v350
        %v459 = vpop.f32.mrf.mxu0
        %v460 = vadd.f32 %v298, %v459
        %v461 = vpop.f32.mrf.mxu0
        %v462 = vadd.f32 %v303, %v461
        %463 = vmatmul.bf16.gmra.mxu0 %v353
        %v464 = vpop.f32.mrf.mxu0
        %v465 = vadd.f32 %v308, %v464
        %v466 = vpop.f32.mrf.mxu0
        %v467 = vadd.f32 %v313, %v466
        %468 = vmatmul.bf16.gmra.mxu0 %v356
        %v469 = vpop.f32.mrf.mxu0
        %v470 = vadd.f32 %v318, %v469
        %v471 = vpop.f32.mrf.mxu0
        %v472 = vadd.f32 %v323, %v471
        %473 = vdwg.mxu0
        %v474 = vmul.f32 %v368, 0.01
        %v475 = vmul.f32 %v397, 0.01
        %v476 = vmul.f32 %v426, 0.01
        %v477 = vmul.f32 %v455, 0.01
        %v478 = vmul.f32 %v370, 0.01
        %v479 = vmul.f32 %v399, 0.01
        %v480 = vmul.f32 %v428, 0.01
        %v481 = vmul.f32 %v457, 0.01
        %v482 = vmul.f32 %v373, 0.01
        %v483 = vmul.f32 %v402, 0.01
        %v484 = vmul.f32 %v431, 0.01
        %v485 = vmul.f32 %v460, 0.01
        %v486 = vmul.f32 %v375, 0.01
        %v487 = vmul.f32 %v404, 0.01
        %v488 = vmul.f32 %v433, 0.01
        %v489 = vmul.f32 %v462, 0.01
        %v490 = vmul.f32 %v378, 0.01
        %v491 = vmul.f32 %v407, 0.01
        %v492 = vmul.f32 %v436, 0.01
        %v493 = vmul.f32 %v465, 0.01
        %v494 = vmul.f32 %v380, 0.01
        %v495 = vmul.f32 %v409, 0.01
        %v496 = vmul.f32 %v438, 0.01
        %v497 = vmul.f32 %v467, 0.01
        %v498 = vmul.f32 %v383, 0.01
        %v499 = vmul.f32 %v412, 0.01
        %v500 = vmul.f32 %v441, 0.01
        %v501 = vmul.f32 %v470, 0.01
        %v502 = vmul.f32 %v385, 0.01
        %v503 = vmul.f32 %v414, 0.01
        %v504 = vmul.f32 %v443, 0.01
        %v505 = vmul.f32 %v472, 0.01
        %v506 = vmax.f32 %v368, %v474
        %v507 = vmax.f32 %v397, %v475
        %v508 = vmax.f32 %v426, %v476
        %v509 = vmax.f32 %v455, %v477
        %v510 = vmax.f32 %v370, %v478
        %v511 = vmax.f32 %v399, %v479
        %v512 = vmax.f32 %v428, %v480
        %v513 = vmax.f32 %v457, %v481
        %v514 = vmax.f32 %v373, %v482
        %v515 = vmax.f32 %v402, %v483
        %v516 = vmax.f32 %v431, %v484
        %v517 = vmax.f32 %v460, %v485
        %v518 = vmax.f32 %v375, %v486
        %v519 = vmax.f32 %v404, %v487
        %v520 = vmax.f32 %v433, %v488
        %v521 = vmax.f32 %v462, %v489
        %v522 = vmax.f32 %v378, %v490
        %v523 = vmax.f32 %v407, %v491
        %v524 = vmax.f32 %v436, %v492
        %v525 = vmax.f32 %v465, %v493
        %v526 = vmax.f32 %v380, %v494
        %v527 = vmax.f32 %v409, %v495
        %v528 = vmax.f32 %v438, %v496
        %v529 = vmax.f32 %v467, %v497
        %v530 = vmax.f32 %v383, %v498
        %v531 = vmax.f32 %v412, %v499
        %v532 = vmax.f32 %v441, %v500
        %v533 = vmax.f32 %v470, %v501
        %v534 = vmax.f32 %v385, %v502
        %v535 = vmax.f32 %v414, %v503
        %v536 = vmax.f32 %v443, %v504
        %v537 = vmax.f32 %v472, %v505
        %v538 = vld [vmem:[%s2] sm:$0xf]
        %v539 = vld [vmem:[%s2 + $0x4] sm:$0xf]
        %v540 = vld [vmem:[%s2 + $0x8] sm:$0xf]
        %v541 = vld [vmem:[%s2 + $0xc] sm:$0xf]
        %v542 = vld [vmem:[%s2 + $0x10] sm:$0xf]
        %v543 = vld [vmem:[%s2 + $0x14] sm:$0xf]
        %v544 = vld [vmem:[%s2 + $0x18] sm:$0xf]
        %v545 = vld [vmem:[%s2 + $0x1c] sm:$0xf]
        %v546 = vpack.c.bf16 %v510, %v506
        %v547 = vpack.c.bf16 %v511, %v507
        %v548 = vpack.c.bf16 %v512, %v508
        %v549 = vpack.c.bf16 %v513, %v509
        %v550 = vpack.c.bf16 %v518, %v514
        %v551 = vpack.c.bf16 %v519, %v515
        %v552 = vpack.c.bf16 %v520, %v516
        %v553 = vpack.c.bf16 %v521, %v517
        %v554 = vpack.c.bf16 %v526, %v522
        %v555 = vpack.c.bf16 %v527, %v523
        %v556 = vpack.c.bf16 %v528, %v524
        %v557 = vpack.c.bf16 %v529, %v525
        %v558 = vpack.c.bf16 %v534, %v530
        %v559 = vpack.c.bf16 %v535, %v531
        %v560 = vpack.c.bf16 %v536, %v532
        %v561 = vpack.c.bf16 %v537, %v533
        %s562 = scalar_lea.vmem %s3, 64
        %v563 = vld [vmem:[%s562] sm:$0xff]
        %v564 = vld [vmem:[%s562 + $0x8] sm:$0xff]
        %v565 = vld [vmem:[%s562 + $0x10] sm:$0xff]
        %v566 = vld [vmem:[%s562 + $0x18] sm:$0xff]
        %v567 = vld [vmem:[%s562 + $0x20] sm:$0xff]
        %v568 = vld [vmem:[%s562 + $0x28] sm:$0xff]
        %v569 = vld [vmem:[%s562 + $0x30] sm:$0xff]
        %v570 = vld [vmem:[%s562 + $0x38] sm:$0xff]
        %572 = vset.pattern.permute.xlu0 0
        %573 = vperm.xlu0 %572, %v563
        %v574 = vpop.permute.xlu0 %573
        %577 = vset.pattern.permute.xlu0 0
        %578 = vperm.xlu0 %577, %v564
        %v579 = vpop.permute.xlu0 %578
        %582 = vset.pattern.permute.xlu0 0
        %583 = vperm.xlu0 %582, %v565
        %v584 = vpop.permute.xlu0 %583
        %587 = vset.pattern.permute.xlu0 0
        %588 = vperm.xlu0 %587, %v566
        %v589 = vpop.permute.xlu0 %588
        %592 = vset.pattern.permute.xlu0 0
        %593 = vperm.xlu0 %592, %v567
        %v594 = vpop.permute.xlu0 %593
        %597 = vset.pattern.permute.xlu0 0
        %598 = vperm.xlu0 %597, %v568
        %v599 = vpop.permute.xlu0 %598
        %602 = vset.pattern.permute.xlu0 0
        %603 = vperm.xlu0 %602, %v569
        %v604 = vpop.permute.xlu0 %603
        %607 = vset.pattern.permute.xlu0 0
        %608 = vperm.xlu0 %607, %v570
        %v609 = vpop.permute.xlu0 %608
        %v619 = vunpack.c.l.b16 %v538
        %v620 = vunpack.c.l.b16 %v539
        %v621 = vunpack.c.l.b16 %v540
        %v622 = vunpack.c.l.b16 %v541
        %v623 = vunpack.c.l.b16 %v542
        %v624 = vunpack.c.l.b16 %v543
        %v625 = vunpack.c.l.b16 %v544
        %v626 = vunpack.c.l.b16 %v545
        %v627 = vpack.c.b16 %v620, %v619
        %v628 = vpack.c.b16 %v622, %v621
        %v629 = vpack.c.b16 %v624, %v623
        %v630 = vpack.c.b16 %v626, %v625
        %vm631 = vcmask 523264
        %v633 = vsel %vm631, %v627, 0
        %v636 = vsel %vm631, %v628, 0
        %v639 = vsel %vm631, %v629, 0
        %v642 = vsel %vm631, %v630, 0
        %644 = vmatpush.bf16.msra.mxu0 0
        %645 = vmatpush.bf16.msra.mxu0 0
        %646 = vmatpush.bf16.msra.mxu0 0
        %647 = vmatpush.bf16.msra.mxu0 0
        %648 = vmatpush.bf16.msra.mxu0 %v558
        %649 = vmatpush.bf16.msra.mxu0 %v554
        %650 = vmatpush.bf16.msra.mxu0 %v550
        %651 = vmatpush.bf16.msra.mxu0 %v546
        %652 = vmatmul.bf16.gmra.mxu0 %v633
        %v653 = vpop.f32.mrf.mxu0
        %v654 = vadd.f32 %v574, %v653
        %v655 = vpop.f32.mrf.mxu0
        %v656 = vadd.f32 %v579, %v655
        %657 = vmatmul.bf16.gmra.mxu0 %v636
        %v658 = vpop.f32.mrf.mxu0
        %v659 = vadd.f32 %v584, %v658
        %v660 = vpop.f32.mrf.mxu0
        %v661 = vadd.f32 %v589, %v660
        %662 = vmatmul.bf16.gmra.mxu0 %v639
        %v663 = vpop.f32.mrf.mxu0
        %v664 = vadd.f32 %v594, %v663
        %v665 = vpop.f32.mrf.mxu0
        %v666 = vadd.f32 %v599, %v665
        %667 = vmatmul.bf16.gmra.mxu0 %v642
        %v668 = vpop.f32.mrf.mxu0
        %v669 = vadd.f32 %v604, %v668
        %v670 = vpop.f32.mrf.mxu0
        %v671 = vadd.f32 %v609, %v670
        %672 = vdwg.mxu0
        %673 = vmatpush.bf16.msra.mxu0 0
        %674 = vmatpush.bf16.msra.mxu0 0
        %675 = vmatpush.bf16.msra.mxu0 0
        %676 = vmatpush.bf16.msra.mxu0 0
        %677 = vmatpush.bf16.msra.mxu0 %v559
        %678 = vmatpush.bf16.msra.mxu0 %v555
        %679 = vmatpush.bf16.msra.mxu0 %v551
        %680 = vmatpush.bf16.msra.mxu0 %v547
        %681 = vmatmul.bf16.gmra.mxu0 %v633
        %v682 = vpop.f32.mrf.mxu0
        %v683 = vadd.f32 %v574, %v682
        %v684 = vpop.f32.mrf.mxu0
        %v685 = vadd.f32 %v579, %v684
        %686 = vmatmul.bf16.gmra.mxu0 %v636
        %v687 = vpop.f32.mrf.mxu0
        %v688 = vadd.f32 %v584, %v687
        %v689 = vpop.f32.mrf.mxu0
        %v690 = vadd.f32 %v589, %v689
        %691 = vmatmul.bf16.gmra.mxu0 %v639
        %v692 = vpop.f32.mrf.mxu0
        %v693 = vadd.f32 %v594, %v692
        %v694 = vpop.f32.mrf.mxu0
        %v695 = vadd.f32 %v599, %v694
        %696 = vmatmul.bf16.gmra.mxu0 %v642
        %v697 = vpop.f32.mrf.mxu0
        %v698 = vadd.f32 %v604, %v697
        %v699 = vpop.f32.mrf.mxu0
        %v700 = vadd.f32 %v609, %v699
        %701 = vdwg.mxu0
        %702 = vmatpush.bf16.msra.mxu0 0
        %703 = vmatpush.bf16.msra.mxu0 0
        %704 = vmatpush.bf16.msra.mxu0 0
        %705 = vmatpush.bf16.msra.mxu0 0
        %706 = vmatpush.bf16.msra.mxu0 %v560
        %707 = vmatpush.bf16.msra.mxu0 %v556
        %708 = vmatpush.bf16.msra.mxu0 %v552
        %709 = vmatpush.bf16.msra.mxu0 %v548
        %710 = vmatmul.bf16.gmra.mxu0 %v633
        %v711 = vpop.f32.mrf.mxu0
        %v712 = vadd.f32 %v574, %v711
        %v713 = vpop.f32.mrf.mxu0
        %v714 = vadd.f32 %v579, %v713
        %715 = vmatmul.bf16.gmra.mxu0 %v636
        %v716 = vpop.f32.mrf.mxu0
        %v717 = vadd.f32 %v584, %v716
        %v718 = vpop.f32.mrf.mxu0
        %v719 = vadd.f32 %v589, %v718
        %720 = vmatmul.bf16.gmra.mxu0 %v639
        %v721 = vpop.f32.mrf.mxu0
        %v722 = vadd.f32 %v594, %v721
        %v723 = vpop.f32.mrf.mxu0
        %v724 = vadd.f32 %v599, %v723
        %725 = vmatmul.bf16.gmra.mxu0 %v642
        %v726 = vpop.f32.mrf.mxu0
        %v727 = vadd.f32 %v604, %v726
        %v728 = vpop.f32.mrf.mxu0
        %v729 = vadd.f32 %v609, %v728
        %730 = vdwg.mxu0
        %731 = vmatpush.bf16.msra.mxu0 0
        %732 = vmatpush.bf16.msra.mxu0 0
        %733 = vmatpush.bf16.msra.mxu0 0
        %734 = vmatpush.bf16.msra.mxu0 0
        %735 = vmatpush.bf16.msra.mxu0 %v561
        %736 = vmatpush.bf16.msra.mxu0 %v557
        %737 = vmatpush.bf16.msra.mxu0 %v553
        %738 = vmatpush.bf16.msra.mxu0 %v549
        %739 = vmatmul.bf16.gmra.mxu0 %v633
        %v740 = vpop.f32.mrf.mxu0
        %v741 = vadd.f32 %v574, %v740
        %v742 = vpop.f32.mrf.mxu0
        %v743 = vadd.f32 %v579, %v742
        %744 = vmatmul.bf16.gmra.mxu0 %v636
        %v745 = vpop.f32.mrf.mxu0
        %v746 = vadd.f32 %v584, %v745
        %v747 = vpop.f32.mrf.mxu0
        %v748 = vadd.f32 %v589, %v747
        %749 = vmatmul.bf16.gmra.mxu0 %v639
        %v750 = vpop.f32.mrf.mxu0
        %v751 = vadd.f32 %v594, %v750
        %v752 = vpop.f32.mrf.mxu0
        %v753 = vadd.f32 %v599, %v752
        %754 = vmatmul.bf16.gmra.mxu0 %v642
        %v755 = vpop.f32.mrf.mxu0
        %v756 = vadd.f32 %v604, %v755
        %v757 = vpop.f32.mrf.mxu0
        %v758 = vadd.f32 %v609, %v757
        %759 = vdwg.mxu0
        %v760 = vmul.f32 %v654, 0.01
        %v761 = vmul.f32 %v683, 0.01
        %v762 = vmul.f32 %v712, 0.01
        %v763 = vmul.f32 %v741, 0.01
        %v764 = vmul.f32 %v656, 0.01
        %v765 = vmul.f32 %v685, 0.01
        %v766 = vmul.f32 %v714, 0.01
        %v767 = vmul.f32 %v743, 0.01
        %v768 = vmul.f32 %v659, 0.01
        %v769 = vmul.f32 %v688, 0.01
        %v770 = vmul.f32 %v717, 0.01
        %v771 = vmul.f32 %v746, 0.01
        %v772 = vmul.f32 %v661, 0.01
        %v773 = vmul.f32 %v690, 0.01
        %v774 = vmul.f32 %v719, 0.01
        %v775 = vmul.f32 %v748, 0.01
        %v776 = vmul.f32 %v664, 0.01
        %v777 = vmul.f32 %v693, 0.01
        %v778 = vmul.f32 %v722, 0.01
        %v779 = vmul.f32 %v751, 0.01
        %v780 = vmul.f32 %v666, 0.01
        %v781 = vmul.f32 %v695, 0.01
        %v782 = vmul.f32 %v724, 0.01
        %v783 = vmul.f32 %v753, 0.01
        %v784 = vmul.f32 %v669, 0.01
        %v785 = vmul.f32 %v698, 0.01
        %v786 = vmul.f32 %v727, 0.01
        %v787 = vmul.f32 %v756, 0.01
        %v788 = vmul.f32 %v671, 0.01
        %v789 = vmul.f32 %v700, 0.01
        %v790 = vmul.f32 %v729, 0.01
        %v791 = vmul.f32 %v758, 0.01
        %v792 = vmax.f32 %v654, %v760
        %v793 = vmax.f32 %v683, %v761
        %v794 = vmax.f32 %v712, %v762
        %v795 = vmax.f32 %v741, %v763
        %v796 = vmax.f32 %v656, %v764
        %v797 = vmax.f32 %v685, %v765
        %v798 = vmax.f32 %v714, %v766
        %v799 = vmax.f32 %v743, %v767
        %v800 = vmax.f32 %v659, %v768
        %v801 = vmax.f32 %v688, %v769
        %v802 = vmax.f32 %v717, %v770
        %v803 = vmax.f32 %v746, %v771
        %v804 = vmax.f32 %v661, %v772
        %v805 = vmax.f32 %v690, %v773
        %v806 = vmax.f32 %v719, %v774
        %v807 = vmax.f32 %v748, %v775
        %v808 = vmax.f32 %v664, %v776
        %v809 = vmax.f32 %v693, %v777
        %v810 = vmax.f32 %v722, %v778
        %v811 = vmax.f32 %v751, %v779
        %v812 = vmax.f32 %v666, %v780
        %v813 = vmax.f32 %v695, %v781
        %v814 = vmax.f32 %v724, %v782
        %v815 = vmax.f32 %v753, %v783
        %v816 = vmax.f32 %v669, %v784
        %v817 = vmax.f32 %v698, %v785
        %v818 = vmax.f32 %v727, %v786
        %v819 = vmax.f32 %v756, %v787
        %v820 = vmax.f32 %v671, %v788
        %v821 = vmax.f32 %v700, %v789
        %v822 = vmax.f32 %v729, %v790
        %v823 = vmax.f32 %v758, %v791
        %s824 = scalar_lea.vmem %s2, 32
        %v825 = vld [vmem:[%s824] sm:$0xf]
        %v826 = vld [vmem:[%s824 + $0x4] sm:$0xf]
        %v827 = vld [vmem:[%s824 + $0x8] sm:$0xf]
        %v828 = vld [vmem:[%s824 + $0xc] sm:$0xf]
        %v829 = vld [vmem:[%s824 + $0x10] sm:$0xf]
        %v830 = vld [vmem:[%s824 + $0x14] sm:$0xf]
        %v831 = vld [vmem:[%s824 + $0x18] sm:$0xf]
        %v832 = vld [vmem:[%s824 + $0x1c] sm:$0xf]
        %v833 = vpack.c.bf16 %v796, %v792
        %v834 = vpack.c.bf16 %v797, %v793
        %v835 = vpack.c.bf16 %v798, %v794
        %v836 = vpack.c.bf16 %v799, %v795
        %v837 = vpack.c.bf16 %v804, %v800
        %v838 = vpack.c.bf16 %v805, %v801
        %v839 = vpack.c.bf16 %v806, %v802
        %v840 = vpack.c.bf16 %v807, %v803
        %v841 = vpack.c.bf16 %v812, %v808
        %v842 = vpack.c.bf16 %v813, %v809
        %v843 = vpack.c.bf16 %v814, %v810
        %v844 = vpack.c.bf16 %v815, %v811
        %v845 = vpack.c.bf16 %v820, %v816
        %v846 = vpack.c.bf16 %v821, %v817
        %v847 = vpack.c.bf16 %v822, %v818
        %v848 = vpack.c.bf16 %v823, %v819
        %s849 = scalar_lea.vmem %s3, 128
        %v850 = vld [vmem:[%s849] sm:$0xff]
        %v851 = vld [vmem:[%s849 + $0x8] sm:$0xff]
        %v852 = vld [vmem:[%s849 + $0x10] sm:$0xff]
        %v853 = vld [vmem:[%s849 + $0x18] sm:$0xff]
        %v854 = vld [vmem:[%s849 + $0x20] sm:$0xff]
        %v855 = vld [vmem:[%s849 + $0x28] sm:$0xff]
        %v856 = vld [vmem:[%s849 + $0x30] sm:$0xff]
        %v857 = vld [vmem:[%s849 + $0x38] sm:$0xff]
        %859 = vset.pattern.permute.xlu0 0
        %860 = vperm.xlu0 %859, %v850
        %v861 = vpop.permute.xlu0 %860
        %864 = vset.pattern.permute.xlu0 0
        %865 = vperm.xlu0 %864, %v851
        %v866 = vpop.permute.xlu0 %865
        %869 = vset.pattern.permute.xlu0 0
        %870 = vperm.xlu0 %869, %v852
        %v871 = vpop.permute.xlu0 %870
        %874 = vset.pattern.permute.xlu0 0
        %875 = vperm.xlu0 %874, %v853
        %v876 = vpop.permute.xlu0 %875
        %879 = vset.pattern.permute.xlu0 0
        %880 = vperm.xlu0 %879, %v854
        %v881 = vpop.permute.xlu0 %880
        %884 = vset.pattern.permute.xlu0 0
        %885 = vperm.xlu0 %884, %v855
        %v886 = vpop.permute.xlu0 %885
        %889 = vset.pattern.permute.xlu0 0
        %890 = vperm.xlu0 %889, %v856
        %v891 = vpop.permute.xlu0 %890
        %894 = vset.pattern.permute.xlu0 0
        %895 = vperm.xlu0 %894, %v857
        %v896 = vpop.permute.xlu0 %895
        %v906 = vunpack.c.l.b16 %v825
        %v907 = vunpack.c.l.b16 %v826
        %v908 = vunpack.c.l.b16 %v827
        %v909 = vunpack.c.l.b16 %v828
        %v910 = vunpack.c.l.b16 %v829
        %v911 = vunpack.c.l.b16 %v830
        %v912 = vunpack.c.l.b16 %v831
        %v913 = vunpack.c.l.b16 %v832
        %v914 = vpack.c.b16 %v907, %v906
        %v915 = vpack.c.b16 %v909, %v908
        %v916 = vpack.c.b16 %v911, %v910
        %v917 = vpack.c.b16 %v913, %v912
        %v919 = vsel %vm631, %v914, 0
        %v922 = vsel %vm631, %v915, 0
        %v925 = vsel %vm631, %v916, 0
        %v928 = vsel %vm631, %v917, 0
        %930 = vmatpush.bf16.msra.mxu0 0
        %931 = vmatpush.bf16.msra.mxu0 0
        %932 = vmatpush.bf16.msra.mxu0 0
        %933 = vmatpush.bf16.msra.mxu0 0
        %934 = vmatpush.bf16.msra.mxu0 %v845
        %935 = vmatpush.bf16.msra.mxu0 %v841
        %936 = vmatpush.bf16.msra.mxu0 %v837
        %937 = vmatpush.bf16.msra.mxu0 %v833
        %938 = vmatmul.bf16.gmra.mxu0 %v919
        %v939 = vpop.f32.mrf.mxu0
        %v940 = vadd.f32 %v861, %v939
        %v941 = vpop.f32.mrf.mxu0
        %v942 = vadd.f32 %v866, %v941
        %943 = vmatmul.bf16.gmra.mxu0 %v922
        %v944 = vpop.f32.mrf.mxu0
        %v945 = vadd.f32 %v871, %v944
        %v946 = vpop.f32.mrf.mxu0
        %v947 = vadd.f32 %v876, %v946
        %948 = vmatmul.bf16.gmra.mxu0 %v925
        %v949 = vpop.f32.mrf.mxu0
        %v950 = vadd.f32 %v881, %v949
        %v951 = vpop.f32.mrf.mxu0
        %v952 = vadd.f32 %v886, %v951
        %953 = vmatmul.bf16.gmra.mxu0 %v928
        %v954 = vpop.f32.mrf.mxu0
        %v955 = vadd.f32 %v891, %v954
        %v956 = vpop.f32.mrf.mxu0
        %v957 = vadd.f32 %v896, %v956
        %958 = vdwg.mxu0
        %959 = vmatpush.bf16.msra.mxu0 0
        %960 = vmatpush.bf16.msra.mxu0 0
        %961 = vmatpush.bf16.msra.mxu0 0
        %962 = vmatpush.bf16.msra.mxu0 0
        %963 = vmatpush.bf16.msra.mxu0 %v846
        %964 = vmatpush.bf16.msra.mxu0 %v842
        %965 = vmatpush.bf16.msra.mxu0 %v838
        %966 = vmatpush.bf16.msra.mxu0 %v834
        %967 = vmatmul.bf16.gmra.mxu0 %v919
        %v968 = vpop.f32.mrf.mxu0
        %v969 = vadd.f32 %v861, %v968
        %v970 = vpop.f32.mrf.mxu0
        %v971 = vadd.f32 %v866, %v970
        %972 = vmatmul.bf16.gmra.mxu0 %v922
        %v973 = vpop.f32.mrf.mxu0
        %v974 = vadd.f32 %v871, %v973
        %v975 = vpop.f32.mrf.mxu0
        %v976 = vadd.f32 %v876, %v975
        %977 = vmatmul.bf16.gmra.mxu0 %v925
        %v978 = vpop.f32.mrf.mxu0
        %v979 = vadd.f32 %v881, %v978
        %v980 = vpop.f32.mrf.mxu0
        %v981 = vadd.f32 %v886, %v980
        %982 = vmatmul.bf16.gmra.mxu0 %v928
        %v983 = vpop.f32.mrf.mxu0
        %v984 = vadd.f32 %v891, %v983
        %v985 = vpop.f32.mrf.mxu0
        %v986 = vadd.f32 %v896, %v985
        %987 = vdwg.mxu0
        %988 = vmatpush.bf16.msra.mxu0 0
        %989 = vmatpush.bf16.msra.mxu0 0
        %990 = vmatpush.bf16.msra.mxu0 0
        %991 = vmatpush.bf16.msra.mxu0 0
        %992 = vmatpush.bf16.msra.mxu0 %v847
        %993 = vmatpush.bf16.msra.mxu0 %v843
        %994 = vmatpush.bf16.msra.mxu0 %v839
        %995 = vmatpush.bf16.msra.mxu0 %v835
        %996 = vmatmul.bf16.gmra.mxu0 %v919
        %v997 = vpop.f32.mrf.mxu0
        %v998 = vadd.f32 %v861, %v997
        %v999 = vpop.f32.mrf.mxu0
        %v1000 = vadd.f32 %v866, %v999
        %1001 = vmatmul.bf16.gmra.mxu0 %v922
        %v1002 = vpop.f32.mrf.mxu0
        %v1003 = vadd.f32 %v871, %v1002
        %v1004 = vpop.f32.mrf.mxu0
        %v1005 = vadd.f32 %v876, %v1004
        %1006 = vmatmul.bf16.gmra.mxu0 %v925
        %v1007 = vpop.f32.mrf.mxu0
        %v1008 = vadd.f32 %v881, %v1007
        %v1009 = vpop.f32.mrf.mxu0
        %v1010 = vadd.f32 %v886, %v1009
        %1011 = vmatmul.bf16.gmra.mxu0 %v928
        %v1012 = vpop.f32.mrf.mxu0
        %v1013 = vadd.f32 %v891, %v1012
        %v1014 = vpop.f32.mrf.mxu0
        %v1015 = vadd.f32 %v896, %v1014
        %1016 = vdwg.mxu0
        %1017 = vmatpush.bf16.msra.mxu0 0
        %1018 = vmatpush.bf16.msra.mxu0 0
        %1019 = vmatpush.bf16.msra.mxu0 0
        %1020 = vmatpush.bf16.msra.mxu0 0
        %1021 = vmatpush.bf16.msra.mxu0 %v848
        %1022 = vmatpush.bf16.msra.mxu0 %v844
        %1023 = vmatpush.bf16.msra.mxu0 %v840
        %1024 = vmatpush.bf16.msra.mxu0 %v836
        %1025 = vmatmul.bf16.gmra.mxu0 %v919
        %v1026 = vpop.f32.mrf.mxu0
        %v1027 = vadd.f32 %v861, %v1026
        %v1028 = vpop.f32.mrf.mxu0
        %v1029 = vadd.f32 %v866, %v1028
        %1030 = vmatmul.bf16.gmra.mxu0 %v922
        %v1031 = vpop.f32.mrf.mxu0
        %v1032 = vadd.f32 %v871, %v1031
        %v1033 = vpop.f32.mrf.mxu0
        %v1034 = vadd.f32 %v876, %v1033
        %1035 = vmatmul.bf16.gmra.mxu0 %v925
        %v1036 = vpop.f32.mrf.mxu0
        %v1037 = vadd.f32 %v881, %v1036
        %v1038 = vpop.f32.mrf.mxu0
        %v1039 = vadd.f32 %v886, %v1038
        %1040 = vmatmul.bf16.gmra.mxu0 %v928
        %v1041 = vpop.f32.mrf.mxu0
        %v1042 = vadd.f32 %v891, %v1041
        %v1043 = vpop.f32.mrf.mxu0
        %v1044 = vadd.f32 %v896, %v1043
        %1045 = vdwg.mxu0
        %v1046 = vmul.f32 %v940, 0.01
        %v1047 = vmul.f32 %v969, 0.01
        %v1048 = vmul.f32 %v998, 0.01
        %v1049 = vmul.f32 %v1027, 0.01
        %v1050 = vmul.f32 %v942, 0.01
        %v1051 = vmul.f32 %v971, 0.01
        %v1052 = vmul.f32 %v1000, 0.01
        %v1053 = vmul.f32 %v1029, 0.01
        %v1054 = vmul.f32 %v945, 0.01
        %v1055 = vmul.f32 %v974, 0.01
        %v1056 = vmul.f32 %v1003, 0.01
        %v1057 = vmul.f32 %v1032, 0.01
        %v1058 = vmul.f32 %v947, 0.01
        %v1059 = vmul.f32 %v976, 0.01
        %v1060 = vmul.f32 %v1005, 0.01
        %v1061 = vmul.f32 %v1034, 0.01
        %v1062 = vmul.f32 %v950, 0.01
        %v1063 = vmul.f32 %v979, 0.01
        %v1064 = vmul.f32 %v1008, 0.01
        %v1065 = vmul.f32 %v1037, 0.01
        %v1066 = vmul.f32 %v952, 0.01
        %v1067 = vmul.f32 %v981, 0.01
        %v1068 = vmul.f32 %v1010, 0.01
        %v1069 = vmul.f32 %v1039, 0.01
        %v1070 = vmul.f32 %v955, 0.01
        %v1071 = vmul.f32 %v984, 0.01
        %v1072 = vmul.f32 %v1013, 0.01
        %v1073 = vmul.f32 %v1042, 0.01
        %v1074 = vmul.f32 %v957, 0.01
        %v1075 = vmul.f32 %v986, 0.01
        %v1076 = vmul.f32 %v1015, 0.01
        %v1077 = vmul.f32 %v1044, 0.01
        %v1078 = vmax.f32 %v940, %v1046
        %v1079 = vmax.f32 %v969, %v1047
        %v1080 = vmax.f32 %v998, %v1048
        %v1081 = vmax.f32 %v1027, %v1049
        %v1082 = vmax.f32 %v942, %v1050
        %v1083 = vmax.f32 %v971, %v1051
        %v1084 = vmax.f32 %v1000, %v1052
        %v1085 = vmax.f32 %v1029, %v1053
        %v1086 = vmax.f32 %v945, %v1054
        %v1087 = vmax.f32 %v974, %v1055
        %v1088 = vmax.f32 %v1003, %v1056
        %v1089 = vmax.f32 %v1032, %v1057
        %v1090 = vmax.f32 %v947, %v1058
        %v1091 = vmax.f32 %v976, %v1059
        %v1092 = vmax.f32 %v1005, %v1060
        %v1093 = vmax.f32 %v1034, %v1061
        %v1094 = vmax.f32 %v950, %v1062
        %v1095 = vmax.f32 %v979, %v1063
        %v1096 = vmax.f32 %v1008, %v1064
        %v1097 = vmax.f32 %v1037, %v1065
        %v1098 = vmax.f32 %v952, %v1066
        %v1099 = vmax.f32 %v981, %v1067
        %v1100 = vmax.f32 %v1010, %v1068
        %v1101 = vmax.f32 %v1039, %v1069
        %v1102 = vmax.f32 %v955, %v1070
        %v1103 = vmax.f32 %v984, %v1071
        %v1104 = vmax.f32 %v1013, %v1072
        %v1105 = vmax.f32 %v1042, %v1073
        %v1106 = vmax.f32 %v957, %v1074
        %v1107 = vmax.f32 %v986, %v1075
        %v1108 = vmax.f32 %v1015, %v1076
        %v1109 = vmax.f32 %v1044, %v1077
        %s1110 = scalar_lea.vmem %s2, 64
        %v1111 = vld [vmem:[%s1110] sm:$0xf]
        %v1112 = vld [vmem:[%s1110 + $0x4] sm:$0xf]
        %v1113 = vld [vmem:[%s1110 + $0x8] sm:$0xf]
        %v1114 = vld [vmem:[%s1110 + $0xc] sm:$0xf]
        %v1115 = vld [vmem:[%s1110 + $0x10] sm:$0xf]
        %v1116 = vld [vmem:[%s1110 + $0x14] sm:$0xf]
        %v1117 = vld [vmem:[%s1110 + $0x18] sm:$0xf]
        %v1118 = vld [vmem:[%s1110 + $0x1c] sm:$0xf]
        %v1119 = vpack.c.bf16 %v1082, %v1078
        %v1120 = vpack.c.bf16 %v1083, %v1079
        %v1121 = vpack.c.bf16 %v1084, %v1080
        %v1122 = vpack.c.bf16 %v1085, %v1081
        %v1123 = vpack.c.bf16 %v1090, %v1086
        %v1124 = vpack.c.bf16 %v1091, %v1087
        %v1125 = vpack.c.bf16 %v1092, %v1088
        %v1126 = vpack.c.bf16 %v1093, %v1089
        %v1127 = vpack.c.bf16 %v1098, %v1094
        %v1128 = vpack.c.bf16 %v1099, %v1095
        %v1129 = vpack.c.bf16 %v1100, %v1096
        %v1130 = vpack.c.bf16 %v1101, %v1097
        %v1131 = vpack.c.bf16 %v1106, %v1102
        %v1132 = vpack.c.bf16 %v1107, %v1103
        %v1133 = vpack.c.bf16 %v1108, %v1104
        %v1134 = vpack.c.bf16 %v1109, %v1105
        %s1135 = scalar_lea.vmem %s3, 192
        %v1136 = vld [vmem:[%s1135] sm:$0xff]
        %v1137 = vld [vmem:[%s1135 + $0x8] sm:$0xff]
        %v1138 = vld [vmem:[%s1135 + $0x10] sm:$0xff]
        %v1139 = vld [vmem:[%s1135 + $0x18] sm:$0xff]
        %v1140 = vld [vmem:[%s1135 + $0x20] sm:$0xff]
        %v1141 = vld [vmem:[%s1135 + $0x28] sm:$0xff]
        %v1142 = vld [vmem:[%s1135 + $0x30] sm:$0xff]
        %v1143 = vld [vmem:[%s1135 + $0x38] sm:$0xff]
        %1145 = vset.pattern.permute.xlu0 0
        %1146 = vperm.xlu0 %1145, %v1136
        %v1147 = vpop.permute.xlu0 %1146
        %1150 = vset.pattern.permute.xlu0 0
        %1151 = vperm.xlu0 %1150, %v1137
        %v1152 = vpop.permute.xlu0 %1151
        %1155 = vset.pattern.permute.xlu0 0
        %1156 = vperm.xlu0 %1155, %v1138
        %v1157 = vpop.permute.xlu0 %1156
        %1160 = vset.pattern.permute.xlu0 0
        %1161 = vperm.xlu0 %1160, %v1139
        %v1162 = vpop.permute.xlu0 %1161
        %1165 = vset.pattern.permute.xlu0 0
        %1166 = vperm.xlu0 %1165, %v1140
        %v1167 = vpop.permute.xlu0 %1166
        %1170 = vset.pattern.permute.xlu0 0
        %1171 = vperm.xlu0 %1170, %v1141
        %v1172 = vpop.permute.xlu0 %1171
        %1175 = vset.pattern.permute.xlu0 0
        %1176 = vperm.xlu0 %1175, %v1142
        %v1177 = vpop.permute.xlu0 %1176
        %1180 = vset.pattern.permute.xlu0 0
        %1181 = vperm.xlu0 %1180, %v1143
        %v1182 = vpop.permute.xlu0 %1181
        %v1192 = vunpack.c.l.b16 %v1111
        %v1193 = vunpack.c.l.b16 %v1112
        %v1194 = vunpack.c.l.b16 %v1113
        %v1195 = vunpack.c.l.b16 %v1114
        %v1196 = vunpack.c.l.b16 %v1115
        %v1197 = vunpack.c.l.b16 %v1116
        %v1198 = vunpack.c.l.b16 %v1117
        %v1199 = vunpack.c.l.b16 %v1118
        %v1200 = vpack.c.b16 %v1193, %v1192
        %v1201 = vpack.c.b16 %v1195, %v1194
        %v1202 = vpack.c.b16 %v1197, %v1196
        %v1203 = vpack.c.b16 %v1199, %v1198
        %v1205 = vsel %vm631, %v1200, 0
        %v1208 = vsel %vm631, %v1201, 0
        %v1211 = vsel %vm631, %v1202, 0
        %v1214 = vsel %vm631, %v1203, 0
        %1216 = vmatpush.bf16.msra.mxu0 0
        %1217 = vmatpush.bf16.msra.mxu0 0
        %1218 = vmatpush.bf16.msra.mxu0 0
        %1219 = vmatpush.bf16.msra.mxu0 0
        %1220 = vmatpush.bf16.msra.mxu0 %v1131
        %1221 = vmatpush.bf16.msra.mxu0 %v1127
        %1222 = vmatpush.bf16.msra.mxu0 %v1123
        %1223 = vmatpush.bf16.msra.mxu0 %v1119
        %1224 = vmatmul.bf16.gmra.mxu0 %v1205
        %v1225 = vpop.f32.mrf.mxu0
        %v1226 = vadd.f32 %v1147, %v1225
        %v1227 = vpop.f32.mrf.mxu0
        %v1228 = vadd.f32 %v1152, %v1227
        %1229 = vmatmul.bf16.gmra.mxu0 %v1208
        %v1230 = vpop.f32.mrf.mxu0
        %v1231 = vadd.f32 %v1157, %v1230
        %v1232 = vpop.f32.mrf.mxu0
        %v1233 = vadd.f32 %v1162, %v1232
        %1234 = vmatmul.bf16.gmra.mxu0 %v1211
        %v1235 = vpop.f32.mrf.mxu0
        %v1236 = vadd.f32 %v1167, %v1235
        %v1237 = vpop.f32.mrf.mxu0
        %v1238 = vadd.f32 %v1172, %v1237
        %1239 = vmatmul.bf16.gmra.mxu0 %v1214
        %v1240 = vpop.f32.mrf.mxu0
        %v1241 = vadd.f32 %v1177, %v1240
        %v1242 = vpop.f32.mrf.mxu0
        %v1243 = vadd.f32 %v1182, %v1242
        %1244 = vdwg.mxu0
        %1245 = vmatpush.bf16.msra.mxu0 0
        %1246 = vmatpush.bf16.msra.mxu0 0
        %1247 = vmatpush.bf16.msra.mxu0 0
        %1248 = vmatpush.bf16.msra.mxu0 0
        %1249 = vmatpush.bf16.msra.mxu0 %v1132
        %1250 = vmatpush.bf16.msra.mxu0 %v1128
        %1251 = vmatpush.bf16.msra.mxu0 %v1124
        %1252 = vmatpush.bf16.msra.mxu0 %v1120
        %1253 = vmatmul.bf16.gmra.mxu0 %v1205
        %v1254 = vpop.f32.mrf.mxu0
        %v1255 = vadd.f32 %v1147, %v1254
        %v1256 = vpop.f32.mrf.mxu0
        %v1257 = vadd.f32 %v1152, %v1256
        %1258 = vmatmul.bf16.gmra.mxu0 %v1208
        %v1259 = vpop.f32.mrf.mxu0
        %v1260 = vadd.f32 %v1157, %v1259
        %v1261 = vpop.f32.mrf.mxu0
        %v1262 = vadd.f32 %v1162, %v1261
        %1263 = vmatmul.bf16.gmra.mxu0 %v1211
        %v1264 = vpop.f32.mrf.mxu0
        %v1265 = vadd.f32 %v1167, %v1264
        %v1266 = vpop.f32.mrf.mxu0
        %v1267 = vadd.f32 %v1172, %v1266
        %1268 = vmatmul.bf16.gmra.mxu0 %v1214
        %v1269 = vpop.f32.mrf.mxu0
        %v1270 = vadd.f32 %v1177, %v1269
        %v1271 = vpop.f32.mrf.mxu0
        %v1272 = vadd.f32 %v1182, %v1271
        %1273 = vdwg.mxu0
        %1274 = vmatpush.bf16.msra.mxu0 0
        %1275 = vmatpush.bf16.msra.mxu0 0
        %1276 = vmatpush.bf16.msra.mxu0 0
        %1277 = vmatpush.bf16.msra.mxu0 0
        %1278 = vmatpush.bf16.msra.mxu0 %v1133
        %1279 = vmatpush.bf16.msra.mxu0 %v1129
        %1280 = vmatpush.bf16.msra.mxu0 %v1125
        %1281 = vmatpush.bf16.msra.mxu0 %v1121
        %1282 = vmatmul.bf16.gmra.mxu0 %v1205
        %v1283 = vpop.f32.mrf.mxu0
        %v1284 = vadd.f32 %v1147, %v1283
        %v1285 = vpop.f32.mrf.mxu0
        %v1286 = vadd.f32 %v1152, %v1285
        %1287 = vmatmul.bf16.gmra.mxu0 %v1208
        %v1288 = vpop.f32.mrf.mxu0
        %v1289 = vadd.f32 %v1157, %v1288
        %v1290 = vpop.f32.mrf.mxu0
        %v1291 = vadd.f32 %v1162, %v1290
        %1292 = vmatmul.bf16.gmra.mxu0 %v1211
        %v1293 = vpop.f32.mrf.mxu0
        %v1294 = vadd.f32 %v1167, %v1293
        %v1295 = vpop.f32.mrf.mxu0
        %v1296 = vadd.f32 %v1172, %v1295
        %1297 = vmatmul.bf16.gmra.mxu0 %v1214
        %v1298 = vpop.f32.mrf.mxu0
        %v1299 = vadd.f32 %v1177, %v1298
        %v1300 = vpop.f32.mrf.mxu0
        %v1301 = vadd.f32 %v1182, %v1300
        %1302 = vdwg.mxu0
        %1303 = vmatpush.bf16.msra.mxu0 0
        %1304 = vmatpush.bf16.msra.mxu0 0
        %1305 = vmatpush.bf16.msra.mxu0 0
        %1306 = vmatpush.bf16.msra.mxu0 0
        %1307 = vmatpush.bf16.msra.mxu0 %v1134
        %1308 = vmatpush.bf16.msra.mxu0 %v1130
        %1309 = vmatpush.bf16.msra.mxu0 %v1126
        %1310 = vmatpush.bf16.msra.mxu0 %v1122
        %1311 = vmatmul.bf16.gmra.mxu0 %v1205
        %v1312 = vpop.f32.mrf.mxu0
        %v1313 = vadd.f32 %v1147, %v1312
        %v1314 = vpop.f32.mrf.mxu0
        %v1315 = vadd.f32 %v1152, %v1314
        %1316 = vmatmul.bf16.gmra.mxu0 %v1208
        %v1317 = vpop.f32.mrf.mxu0
        %v1318 = vadd.f32 %v1157, %v1317
        %v1319 = vpop.f32.mrf.mxu0
        %v1320 = vadd.f32 %v1162, %v1319
        %1321 = vmatmul.bf16.gmra.mxu0 %v1211
        %v1322 = vpop.f32.mrf.mxu0
        %v1323 = vadd.f32 %v1167, %v1322
        %v1324 = vpop.f32.mrf.mxu0
        %v1325 = vadd.f32 %v1172, %v1324
        %1326 = vmatmul.bf16.gmra.mxu0 %v1214
        %v1327 = vpop.f32.mrf.mxu0
        %v1328 = vadd.f32 %v1177, %v1327
        %v1329 = vpop.f32.mrf.mxu0
        %v1330 = vadd.f32 %v1182, %v1329
        %1331 = vdwg.mxu0
        %v1332 = vmul.f32 %v1226, 0.01
        %v1333 = vmul.f32 %v1255, 0.01
        %v1334 = vmul.f32 %v1284, 0.01
        %v1335 = vmul.f32 %v1313, 0.01
        %v1336 = vmul.f32 %v1228, 0.01
        %v1337 = vmul.f32 %v1257, 0.01
        %v1338 = vmul.f32 %v1286, 0.01
        %v1339 = vmul.f32 %v1315, 0.01
        %v1340 = vmul.f32 %v1231, 0.01
        %v1341 = vmul.f32 %v1260, 0.01
        %v1342 = vmul.f32 %v1289, 0.01
        %v1343 = vmul.f32 %v1318, 0.01
        %v1344 = vmul.f32 %v1233, 0.01
        %v1345 = vmul.f32 %v1262, 0.01
        %v1346 = vmul.f32 %v1291, 0.01
        %v1347 = vmul.f32 %v1320, 0.01
        %v1348 = vmul.f32 %v1236, 0.01
        %v1349 = vmul.f32 %v1265, 0.01
        %v1350 = vmul.f32 %v1294, 0.01
        %v1351 = vmul.f32 %v1323, 0.01
        %v1352 = vmul.f32 %v1238, 0.01
        %v1353 = vmul.f32 %v1267, 0.01
        %v1354 = vmul.f32 %v1296, 0.01
        %v1355 = vmul.f32 %v1325, 0.01
        %v1356 = vmul.f32 %v1241, 0.01
        %v1357 = vmul.f32 %v1270, 0.01
        %v1358 = vmul.f32 %v1299, 0.01
        %v1359 = vmul.f32 %v1328, 0.01
        %v1360 = vmul.f32 %v1243, 0.01
        %v1361 = vmul.f32 %v1272, 0.01
        %v1362 = vmul.f32 %v1301, 0.01
        %v1363 = vmul.f32 %v1330, 0.01
        %v1364 = vmax.f32 %v1226, %v1332
        %v1365 = vmax.f32 %v1255, %v1333
        %v1366 = vmax.f32 %v1284, %v1334
        %v1367 = vmax.f32 %v1313, %v1335
        %v1368 = vmax.f32 %v1228, %v1336
        %v1369 = vmax.f32 %v1257, %v1337
        %v1370 = vmax.f32 %v1286, %v1338
        %v1371 = vmax.f32 %v1315, %v1339
        %v1372 = vmax.f32 %v1231, %v1340
        %v1373 = vmax.f32 %v1260, %v1341
        %v1374 = vmax.f32 %v1289, %v1342
        %v1375 = vmax.f32 %v1318, %v1343
        %v1376 = vmax.f32 %v1233, %v1344
        %v1377 = vmax.f32 %v1262, %v1345
        %v1378 = vmax.f32 %v1291, %v1346
        %v1379 = vmax.f32 %v1320, %v1347
        %v1380 = vmax.f32 %v1236, %v1348
        %v1381 = vmax.f32 %v1265, %v1349
        %v1382 = vmax.f32 %v1294, %v1350
        %v1383 = vmax.f32 %v1323, %v1351
        %v1384 = vmax.f32 %v1238, %v1352
        %v1385 = vmax.f32 %v1267, %v1353
        %v1386 = vmax.f32 %v1296, %v1354
        %v1387 = vmax.f32 %v1325, %v1355
        %v1388 = vmax.f32 %v1241, %v1356
        %v1389 = vmax.f32 %v1270, %v1357
        %v1390 = vmax.f32 %v1299, %v1358
        %v1391 = vmax.f32 %v1328, %v1359
        %v1392 = vmax.f32 %v1243, %v1360
        %v1393 = vmax.f32 %v1272, %v1361
        %v1394 = vmax.f32 %v1301, %v1362
        %v1395 = vmax.f32 %v1330, %v1363
        %s1396 = scalar_lea.vmem %s2, 96
        %v1397 = vld [vmem:[%s1396] sm:$0xf]
        %v1398 = vld [vmem:[%s1396 + $0x4] sm:$0xf]
        %v1399 = vld [vmem:[%s1396 + $0x8] sm:$0xf]
        %v1400 = vld [vmem:[%s1396 + $0xc] sm:$0xf]
        %v1401 = vld [vmem:[%s1396 + $0x10] sm:$0xf]
        %v1402 = vld [vmem:[%s1396 + $0x14] sm:$0xf]
        %v1403 = vld [vmem:[%s1396 + $0x18] sm:$0xf]
        %v1404 = vld [vmem:[%s1396 + $0x1c] sm:$0xf]
        %v1405 = vpack.c.bf16 %v1368, %v1364
        %v1406 = vpack.c.bf16 %v1369, %v1365
        %v1407 = vpack.c.bf16 %v1370, %v1366
        %v1408 = vpack.c.bf16 %v1371, %v1367
        %v1409 = vpack.c.bf16 %v1376, %v1372
        %v1410 = vpack.c.bf16 %v1377, %v1373
        %v1411 = vpack.c.bf16 %v1378, %v1374
        %v1412 = vpack.c.bf16 %v1379, %v1375
        %v1413 = vpack.c.bf16 %v1384, %v1380
        %v1414 = vpack.c.bf16 %v1385, %v1381
        %v1415 = vpack.c.bf16 %v1386, %v1382
        %v1416 = vpack.c.bf16 %v1387, %v1383
        %v1417 = vpack.c.bf16 %v1392, %v1388
        %v1418 = vpack.c.bf16 %v1393, %v1389
        %v1419 = vpack.c.bf16 %v1394, %v1390
        %v1420 = vpack.c.bf16 %v1395, %v1391
        %s1421 = scalar_lea.vmem %s3, 256
        %v1422 = vld [vmem:[%s1421] sm:$0xff]
        %v1423 = vld [vmem:[%s1421 + $0x8] sm:$0xff]
        %v1424 = vld [vmem:[%s1421 + $0x10] sm:$0xff]
        %v1425 = vld [vmem:[%s1421 + $0x18] sm:$0xff]
        %v1426 = vld [vmem:[%s1421 + $0x20] sm:$0xff]
        %v1427 = vld [vmem:[%s1421 + $0x28] sm:$0xff]
        %v1428 = vld [vmem:[%s1421 + $0x30] sm:$0xff]
        %v1429 = vld [vmem:[%s1421 + $0x38] sm:$0xff]
        %1431 = vset.pattern.permute.xlu0 0
        %1432 = vperm.xlu0 %1431, %v1422
        %v1433 = vpop.permute.xlu0 %1432
        %1436 = vset.pattern.permute.xlu0 0
        %1437 = vperm.xlu0 %1436, %v1423
        %v1438 = vpop.permute.xlu0 %1437
        %1441 = vset.pattern.permute.xlu0 0
        %1442 = vperm.xlu0 %1441, %v1424
        %v1443 = vpop.permute.xlu0 %1442
        %1446 = vset.pattern.permute.xlu0 0
        %1447 = vperm.xlu0 %1446, %v1425
        %v1448 = vpop.permute.xlu0 %1447
        %1451 = vset.pattern.permute.xlu0 0
        %1452 = vperm.xlu0 %1451, %v1426
        %v1453 = vpop.permute.xlu0 %1452
        %1456 = vset.pattern.permute.xlu0 0
        %1457 = vperm.xlu0 %1456, %v1427
        %v1458 = vpop.permute.xlu0 %1457
        %1461 = vset.pattern.permute.xlu0 0
        %1462 = vperm.xlu0 %1461, %v1428
        %v1463 = vpop.permute.xlu0 %1462
        %1466 = vset.pattern.permute.xlu0 0
        %1467 = vperm.xlu0 %1466, %v1429
        %v1468 = vpop.permute.xlu0 %1467
        %v1478 = vunpack.c.l.b16 %v1397
        %v1479 = vunpack.c.l.b16 %v1398
        %v1480 = vunpack.c.l.b16 %v1399
        %v1481 = vunpack.c.l.b16 %v1400
        %v1482 = vunpack.c.l.b16 %v1401
        %v1483 = vunpack.c.l.b16 %v1402
        %v1484 = vunpack.c.l.b16 %v1403
        %v1485 = vunpack.c.l.b16 %v1404
        %v1486 = vpack.c.b16 %v1479, %v1478
        %v1487 = vpack.c.b16 %v1481, %v1480
        %v1488 = vpack.c.b16 %v1483, %v1482
        %v1489 = vpack.c.b16 %v1485, %v1484
        %v1491 = vsel %vm631, %v1486, 0
        %v1494 = vsel %vm631, %v1487, 0
        %v1497 = vsel %vm631, %v1488, 0
        %v1500 = vsel %vm631, %v1489, 0
        %1502 = vmatpush.bf16.msra.mxu0 0
        %1503 = vmatpush.bf16.msra.mxu0 0
        %1504 = vmatpush.bf16.msra.mxu0 0
        %1505 = vmatpush.bf16.msra.mxu0 0
        %1506 = vmatpush.bf16.msra.mxu0 %v1417
        %1507 = vmatpush.bf16.msra.mxu0 %v1413
        %1508 = vmatpush.bf16.msra.mxu0 %v1409
        %1509 = vmatpush.bf16.msra.mxu0 %v1405
        %1510 = vmatmul.bf16.gmra.mxu0 %v1491
        %v1511 = vpop.f32.mrf.mxu0
        %v1512 = vadd.f32 %v1433, %v1511
        %v1513 = vpop.f32.mrf.mxu0
        %v1514 = vadd.f32 %v1438, %v1513
        %1515 = vmatmul.bf16.gmra.mxu0 %v1494
        %v1516 = vpop.f32.mrf.mxu0
        %v1517 = vadd.f32 %v1443, %v1516
        %v1518 = vpop.f32.mrf.mxu0
        %v1519 = vadd.f32 %v1448, %v1518
        %1520 = vmatmul.bf16.gmra.mxu0 %v1497
        %v1521 = vpop.f32.mrf.mxu0
        %v1522 = vadd.f32 %v1453, %v1521
        %v1523 = vpop.f32.mrf.mxu0
        %v1524 = vadd.f32 %v1458, %v1523
        %1525 = vmatmul.bf16.gmra.mxu0 %v1500
        %v1526 = vpop.f32.mrf.mxu0
        %v1527 = vadd.f32 %v1463, %v1526
        %v1528 = vpop.f32.mrf.mxu0
        %v1529 = vadd.f32 %v1468, %v1528
        %1530 = vdwg.mxu0
        %1531 = vmatpush.bf16.msra.mxu0 0
        %1532 = vmatpush.bf16.msra.mxu0 0
        %1533 = vmatpush.bf16.msra.mxu0 0
        %1534 = vmatpush.bf16.msra.mxu0 0
        %1535 = vmatpush.bf16.msra.mxu0 %v1418
        %1536 = vmatpush.bf16.msra.mxu0 %v1414
        %1537 = vmatpush.bf16.msra.mxu0 %v1410
        %1538 = vmatpush.bf16.msra.mxu0 %v1406
        %1539 = vmatmul.bf16.gmra.mxu0 %v1491
        %v1540 = vpop.f32.mrf.mxu0
        %v1541 = vadd.f32 %v1433, %v1540
        %v1542 = vpop.f32.mrf.mxu0
        %v1543 = vadd.f32 %v1438, %v1542
        %1544 = vmatmul.bf16.gmra.mxu0 %v1494
        %v1545 = vpop.f32.mrf.mxu0
        %v1546 = vadd.f32 %v1443, %v1545
        %v1547 = vpop.f32.mrf.mxu0
        %v1548 = vadd.f32 %v1448, %v1547
        %1549 = vmatmul.bf16.gmra.mxu0 %v1497
        %v1550 = vpop.f32.mrf.mxu0
        %v1551 = vadd.f32 %v1453, %v1550
        %v1552 = vpop.f32.mrf.mxu0
        %v1553 = vadd.f32 %v1458, %v1552
        %1554 = vmatmul.bf16.gmra.mxu0 %v1500
        %v1555 = vpop.f32.mrf.mxu0
        %v1556 = vadd.f32 %v1463, %v1555
        %v1557 = vpop.f32.mrf.mxu0
        %v1558 = vadd.f32 %v1468, %v1557
        %1559 = vdwg.mxu0
        %1560 = vmatpush.bf16.msra.mxu0 0
        %1561 = vmatpush.bf16.msra.mxu0 0
        %1562 = vmatpush.bf16.msra.mxu0 0
        %1563 = vmatpush.bf16.msra.mxu0 0
        %1564 = vmatpush.bf16.msra.mxu0 %v1419
        %1565 = vmatpush.bf16.msra.mxu0 %v1415
        %1566 = vmatpush.bf16.msra.mxu0 %v1411
        %1567 = vmatpush.bf16.msra.mxu0 %v1407
        %1568 = vmatmul.bf16.gmra.mxu0 %v1491
        %v1569 = vpop.f32.mrf.mxu0
        %v1570 = vadd.f32 %v1433, %v1569
        %v1571 = vpop.f32.mrf.mxu0
        %v1572 = vadd.f32 %v1438, %v1571
        %1573 = vmatmul.bf16.gmra.mxu0 %v1494
        %v1574 = vpop.f32.mrf.mxu0
        %v1575 = vadd.f32 %v1443, %v1574
        %v1576 = vpop.f32.mrf.mxu0
        %v1577 = vadd.f32 %v1448, %v1576
        %1578 = vmatmul.bf16.gmra.mxu0 %v1497
        %v1579 = vpop.f32.mrf.mxu0
        %v1580 = vadd.f32 %v1453, %v1579
        %v1581 = vpop.f32.mrf.mxu0
        %v1582 = vadd.f32 %v1458, %v1581
        %1583 = vmatmul.bf16.gmra.mxu0 %v1500
        %v1584 = vpop.f32.mrf.mxu0
        %v1585 = vadd.f32 %v1463, %v1584
        %v1586 = vpop.f32.mrf.mxu0
        %v1587 = vadd.f32 %v1468, %v1586
        %1588 = vdwg.mxu0
        %1589 = vmatpush.bf16.msra.mxu0 0
        %1590 = vmatpush.bf16.msra.mxu0 0
        %1591 = vmatpush.bf16.msra.mxu0 0
        %1592 = vmatpush.bf16.msra.mxu0 0
        %1593 = vmatpush.bf16.msra.mxu0 %v1420
        %1594 = vmatpush.bf16.msra.mxu0 %v1416
        %1595 = vmatpush.bf16.msra.mxu0 %v1412
        %1596 = vmatpush.bf16.msra.mxu0 %v1408
        %1597 = vmatmul.bf16.gmra.mxu0 %v1491
        %v1598 = vpop.f32.mrf.mxu0
        %v1599 = vadd.f32 %v1433, %v1598
        %v1600 = vpop.f32.mrf.mxu0
        %v1601 = vadd.f32 %v1438, %v1600
        %1602 = vmatmul.bf16.gmra.mxu0 %v1494
        %v1603 = vpop.f32.mrf.mxu0
        %v1604 = vadd.f32 %v1443, %v1603
        %v1605 = vpop.f32.mrf.mxu0
        %v1606 = vadd.f32 %v1448, %v1605
        %1607 = vmatmul.bf16.gmra.mxu0 %v1497
        %v1608 = vpop.f32.mrf.mxu0
        %v1609 = vadd.f32 %v1453, %v1608
        %v1610 = vpop.f32.mrf.mxu0
        %v1611 = vadd.f32 %v1458, %v1610
        %1612 = vmatmul.bf16.gmra.mxu0 %v1500
        %v1613 = vpop.f32.mrf.mxu0
        %v1614 = vadd.f32 %v1463, %v1613
        %v1615 = vpop.f32.mrf.mxu0
        %v1616 = vadd.f32 %v1468, %v1615
        %1617 = vdwg.mxu0
        %s1618 = scalar_lea.vmem %s2, 128
        %v1619 = vld [vmem:[%s1618] sm:$0xf]
        %v1620 = vld [vmem:[%s1618 + $0x4] sm:$0xf]
        %v1621 = vld [vmem:[%s1618 + $0x8] sm:$0xf]
        %v1622 = vld [vmem:[%s1618 + $0xc] sm:$0xf]
        %v1623 = vld [vmem:[%s1618 + $0x10] sm:$0xf]
        %v1624 = vld [vmem:[%s1618 + $0x14] sm:$0xf]
        %v1625 = vld [vmem:[%s1618 + $0x18] sm:$0xf]
        %v1626 = vld [vmem:[%s1618 + $0x1c] sm:$0xf]
        %v1627 = vpack.c.bf16 %v1514, %v1512
        %v1628 = vpack.c.bf16 %v1543, %v1541
        %v1629 = vpack.c.bf16 %v1572, %v1570
        %v1630 = vpack.c.bf16 %v1601, %v1599
        %v1631 = vpack.c.bf16 %v1519, %v1517
        %v1632 = vpack.c.bf16 %v1548, %v1546
        %v1633 = vpack.c.bf16 %v1577, %v1575
        %v1634 = vpack.c.bf16 %v1606, %v1604
        %v1635 = vpack.c.bf16 %v1524, %v1522
        %v1636 = vpack.c.bf16 %v1553, %v1551
        %v1637 = vpack.c.bf16 %v1582, %v1580
        %v1638 = vpack.c.bf16 %v1611, %v1609
        %v1639 = vpack.c.bf16 %v1529, %v1527
        %v1640 = vpack.c.bf16 %v1558, %v1556
        %v1641 = vpack.c.bf16 %v1587, %v1585
        %v1642 = vpack.c.bf16 %v1616, %v1614
        %s1643 = scalar_lea.vmem %s3, 320
        %v1644 = vld [vmem:[%s1643] sm:$0xff]
        %v1645 = vld [vmem:[%s1643 + $0x8] sm:$0xff]
        %v1646 = vld [vmem:[%s1643 + $0x10] sm:$0xff]
        %v1647 = vld [vmem:[%s1643 + $0x18] sm:$0xff]
        %v1648 = vld [vmem:[%s1643 + $0x20] sm:$0xff]
        %v1649 = vld [vmem:[%s1643 + $0x28] sm:$0xff]
        %v1650 = vld [vmem:[%s1643 + $0x30] sm:$0xff]
        %v1651 = vld [vmem:[%s1643 + $0x38] sm:$0xff]
        %1653 = vset.pattern.permute.xlu0 0
        %1654 = vperm.xlu0 %1653, %v1644
        %v1655 = vpop.permute.xlu0 %1654
        %1658 = vset.pattern.permute.xlu0 0
        %1659 = vperm.xlu0 %1658, %v1645
        %v1660 = vpop.permute.xlu0 %1659
        %1663 = vset.pattern.permute.xlu0 0
        %1664 = vperm.xlu0 %1663, %v1646
        %v1665 = vpop.permute.xlu0 %1664
        %1668 = vset.pattern.permute.xlu0 0
        %1669 = vperm.xlu0 %1668, %v1647
        %v1670 = vpop.permute.xlu0 %1669
        %1673 = vset.pattern.permute.xlu0 0
        %1674 = vperm.xlu0 %1673, %v1648
        %v1675 = vpop.permute.xlu0 %1674
        %1678 = vset.pattern.permute.xlu0 0
        %1679 = vperm.xlu0 %1678, %v1649
        %v1680 = vpop.permute.xlu0 %1679
        %1683 = vset.pattern.permute.xlu0 0
        %1684 = vperm.xlu0 %1683, %v1650
        %v1685 = vpop.permute.xlu0 %1684
        %1688 = vset.pattern.permute.xlu0 0
        %1689 = vperm.xlu0 %1688, %v1651
        %v1690 = vpop.permute.xlu0 %1689
        %v1700 = vunpack.c.l.b16 %v1619
        %v1701 = vunpack.c.l.b16 %v1620
        %v1702 = vunpack.c.l.b16 %v1621
        %v1703 = vunpack.c.l.b16 %v1622
        %v1704 = vunpack.c.l.b16 %v1623
        %v1705 = vunpack.c.l.b16 %v1624
        %v1706 = vunpack.c.l.b16 %v1625
        %v1707 = vunpack.c.l.b16 %v1626
        %v1708 = vpack.c.b16 %v1701, %v1700
        %v1709 = vpack.c.b16 %v1703, %v1702
        %v1710 = vpack.c.b16 %v1705, %v1704
        %v1711 = vpack.c.b16 %v1707, %v1706
        %v1713 = vsel %vm631, %v1708, 0
        %v1716 = vsel %vm631, %v1709, 0
        %v1719 = vsel %vm631, %v1710, 0
        %v1722 = vsel %vm631, %v1711, 0
        %1724 = vmatpush.bf16.msra.mxu0 0
        %1725 = vmatpush.bf16.msra.mxu0 0
        %1726 = vmatpush.bf16.msra.mxu0 0
        %1727 = vmatpush.bf16.msra.mxu0 0
        %1728 = vmatpush.bf16.msra.mxu0 %v1639
        %1729 = vmatpush.bf16.msra.mxu0 %v1635
        %1730 = vmatpush.bf16.msra.mxu0 %v1631
        %1731 = vmatpush.bf16.msra.mxu0 %v1627
        %1732 = vmatmul.bf16.gmra.mxu0 %v1713
        %v1733 = vpop.f32.mrf.mxu0
        %v1734 = vadd.f32 %v1655, %v1733
        %v1735 = vpop.f32.mrf.mxu0
        %v1736 = vadd.f32 %v1660, %v1735
        %1737 = vmatmul.bf16.gmra.mxu0 %v1716
        %v1738 = vpop.f32.mrf.mxu0
        %v1739 = vadd.f32 %v1665, %v1738
        %v1740 = vpop.f32.mrf.mxu0
        %v1741 = vadd.f32 %v1670, %v1740
        %1742 = vmatmul.bf16.gmra.mxu0 %v1719
        %v1743 = vpop.f32.mrf.mxu0
        %v1744 = vadd.f32 %v1675, %v1743
        %v1745 = vpop.f32.mrf.mxu0
        %v1746 = vadd.f32 %v1680, %v1745
        %1747 = vmatmul.bf16.gmra.mxu0 %v1722
        %v1748 = vpop.f32.mrf.mxu0
        %v1749 = vadd.f32 %v1685, %v1748
        %v1750 = vpop.f32.mrf.mxu0
        %v1751 = vadd.f32 %v1690, %v1750
        %1752 = vdwg.mxu0
        %1753 = vmatpush.bf16.msra.mxu0 0
        %1754 = vmatpush.bf16.msra.mxu0 0
        %1755 = vmatpush.bf16.msra.mxu0 0
        %1756 = vmatpush.bf16.msra.mxu0 0
        %1757 = vmatpush.bf16.msra.mxu0 %v1640
        %1758 = vmatpush.bf16.msra.mxu0 %v1636
        %1759 = vmatpush.bf16.msra.mxu0 %v1632
        %1760 = vmatpush.bf16.msra.mxu0 %v1628
        %1761 = vmatmul.bf16.gmra.mxu0 %v1713
        %v1762 = vpop.f32.mrf.mxu0
        %v1763 = vadd.f32 %v1655, %v1762
        %v1764 = vpop.f32.mrf.mxu0
        %v1765 = vadd.f32 %v1660, %v1764
        %1766 = vmatmul.bf16.gmra.mxu0 %v1716
        %v1767 = vpop.f32.mrf.mxu0
        %v1768 = vadd.f32 %v1665, %v1767
        %v1769 = vpop.f32.mrf.mxu0
        %v1770 = vadd.f32 %v1670, %v1769
        %1771 = vmatmul.bf16.gmra.mxu0 %v1719
        %v1772 = vpop.f32.mrf.mxu0
        %v1773 = vadd.f32 %v1675, %v1772
        %v1774 = vpop.f32.mrf.mxu0
        %v1775 = vadd.f32 %v1680, %v1774
        %1776 = vmatmul.bf16.gmra.mxu0 %v1722
        %v1777 = vpop.f32.mrf.mxu0
        %v1778 = vadd.f32 %v1685, %v1777
        %v1779 = vpop.f32.mrf.mxu0
        %v1780 = vadd.f32 %v1690, %v1779
        %1781 = vdwg.mxu0
        %1782 = vmatpush.bf16.msra.mxu0 0
        %1783 = vmatpush.bf16.msra.mxu0 0
        %1784 = vmatpush.bf16.msra.mxu0 0
        %1785 = vmatpush.bf16.msra.mxu0 0
        %1786 = vmatpush.bf16.msra.mxu0 %v1641
        %1787 = vmatpush.bf16.msra.mxu0 %v1637
        %1788 = vmatpush.bf16.msra.mxu0 %v1633
        %1789 = vmatpush.bf16.msra.mxu0 %v1629
        %1790 = vmatmul.bf16.gmra.mxu0 %v1713
        %v1791 = vpop.f32.mrf.mxu0
        %v1792 = vadd.f32 %v1655, %v1791
        %v1793 = vpop.f32.mrf.mxu0
        %v1794 = vadd.f32 %v1660, %v1793
        %1795 = vmatmul.bf16.gmra.mxu0 %v1716
        %v1796 = vpop.f32.mrf.mxu0
        %v1797 = vadd.f32 %v1665, %v1796
        %v1798 = vpop.f32.mrf.mxu0
        %v1799 = vadd.f32 %v1670, %v1798
        %1800 = vmatmul.bf16.gmra.mxu0 %v1719
        %v1801 = vpop.f32.mrf.mxu0
        %v1802 = vadd.f32 %v1675, %v1801
        %v1803 = vpop.f32.mrf.mxu0
        %v1804 = vadd.f32 %v1680, %v1803
        %1805 = vmatmul.bf16.gmra.mxu0 %v1722
        %v1806 = vpop.f32.mrf.mxu0
        %v1807 = vadd.f32 %v1685, %v1806
        %v1808 = vpop.f32.mrf.mxu0
        %v1809 = vadd.f32 %v1690, %v1808
        %1810 = vdwg.mxu0
        %1811 = vmatpush.bf16.msra.mxu0 0
        %1812 = vmatpush.bf16.msra.mxu0 0
        %1813 = vmatpush.bf16.msra.mxu0 0
        %1814 = vmatpush.bf16.msra.mxu0 0
        %1815 = vmatpush.bf16.msra.mxu0 %v1642
        %1816 = vmatpush.bf16.msra.mxu0 %v1638
        %1817 = vmatpush.bf16.msra.mxu0 %v1634
        %1818 = vmatpush.bf16.msra.mxu0 %v1630
        %1819 = vmatmul.bf16.gmra.mxu0 %v1713
        %v1820 = vpop.f32.mrf.mxu0
        %v1821 = vadd.f32 %v1655, %v1820
        %v1822 = vpop.f32.mrf.mxu0
        %v1823 = vadd.f32 %v1660, %v1822
        %1824 = vmatmul.bf16.gmra.mxu0 %v1716
        %v1825 = vpop.f32.mrf.mxu0
        %v1826 = vadd.f32 %v1665, %v1825
        %v1827 = vpop.f32.mrf.mxu0
        %v1828 = vadd.f32 %v1670, %v1827
        %1829 = vmatmul.bf16.gmra.mxu0 %v1719
        %v1830 = vpop.f32.mrf.mxu0
        %v1831 = vadd.f32 %v1675, %v1830
        %v1832 = vpop.f32.mrf.mxu0
        %v1833 = vadd.f32 %v1680, %v1832
        %1834 = vmatmul.bf16.gmra.mxu0 %v1722
        %v1835 = vpop.f32.mrf.mxu0
        %v1836 = vadd.f32 %v1685, %v1835
        %v1837 = vpop.f32.mrf.mxu0
        %v1838 = vadd.f32 %v1690, %v1837
        %1839 = vdwg.mxu0
        %v1840 = vmul.f32 %v1734, 0.01
        %v1841 = vmul.f32 %v1763, 0.01
        %v1842 = vmul.f32 %v1792, 0.01
        %v1843 = vmul.f32 %v1821, 0.01
        %v1844 = vmul.f32 %v1736, 0.01
        %v1845 = vmul.f32 %v1765, 0.01
        %v1846 = vmul.f32 %v1794, 0.01
        %v1847 = vmul.f32 %v1823, 0.01
        %v1848 = vmul.f32 %v1739, 0.01
        %v1849 = vmul.f32 %v1768, 0.01
        %v1850 = vmul.f32 %v1797, 0.01
        %v1851 = vmul.f32 %v1826, 0.01
        %v1852 = vmul.f32 %v1741, 0.01
        %v1853 = vmul.f32 %v1770, 0.01
        %v1854 = vmul.f32 %v1799, 0.01
        %v1855 = vmul.f32 %v1828, 0.01
        %v1856 = vmul.f32 %v1744, 0.01
        %v1857 = vmul.f32 %v1773, 0.01
        %v1858 = vmul.f32 %v1802, 0.01
        %v1859 = vmul.f32 %v1831, 0.01
        %v1860 = vmul.f32 %v1746, 0.01
        %v1861 = vmul.f32 %v1775, 0.01
        %v1862 = vmul.f32 %v1804, 0.01
        %v1863 = vmul.f32 %v1833, 0.01
        %v1864 = vmul.f32 %v1749, 0.01
        %v1865 = vmul.f32 %v1778, 0.01
        %v1866 = vmul.f32 %v1807, 0.01
        %v1867 = vmul.f32 %v1836, 0.01
        %v1868 = vmul.f32 %v1751, 0.01
        %v1869 = vmul.f32 %v1780, 0.01
        %v1870 = vmul.f32 %v1809, 0.01
        %v1871 = vmul.f32 %v1838, 0.01
        %v1872 = vmax.f32 %v1734, %v1840
        %v1873 = vmax.f32 %v1763, %v1841
        %v1874 = vmax.f32 %v1792, %v1842
        %v1875 = vmax.f32 %v1821, %v1843
        %v1876 = vmax.f32 %v1736, %v1844
        %v1877 = vmax.f32 %v1765, %v1845
        %v1878 = vmax.f32 %v1794, %v1846
        %v1879 = vmax.f32 %v1823, %v1847
        %v1880 = vmax.f32 %v1739, %v1848
        %v1881 = vmax.f32 %v1768, %v1849
        %v1882 = vmax.f32 %v1797, %v1850
        %v1883 = vmax.f32 %v1826, %v1851
        %v1884 = vmax.f32 %v1741, %v1852
        %v1885 = vmax.f32 %v1770, %v1853
        %v1886 = vmax.f32 %v1799, %v1854
        %v1887 = vmax.f32 %v1828, %v1855
        %v1888 = vmax.f32 %v1744, %v1856
        %v1889 = vmax.f32 %v1773, %v1857
        %v1890 = vmax.f32 %v1802, %v1858
        %v1891 = vmax.f32 %v1831, %v1859
        %v1892 = vmax.f32 %v1746, %v1860
        %v1893 = vmax.f32 %v1775, %v1861
        %v1894 = vmax.f32 %v1804, %v1862
        %v1895 = vmax.f32 %v1833, %v1863
        %v1896 = vmax.f32 %v1749, %v1864
        %v1897 = vmax.f32 %v1778, %v1865
        %v1898 = vmax.f32 %v1807, %v1866
        %v1899 = vmax.f32 %v1836, %v1867
        %v1900 = vmax.f32 %v1751, %v1868
        %v1901 = vmax.f32 %v1780, %v1869
        %v1902 = vmax.f32 %v1809, %v1870
        %v1903 = vmax.f32 %v1838, %v1871
        %s1904 = scalar_lea.vmem %s2, 160
        %v1905 = vld [vmem:[%s1904] sm:$0xf]
        %v1906 = vld [vmem:[%s1904 + $0x4] sm:$0xf]
        %v1907 = vld [vmem:[%s1904 + $0x8] sm:$0xf]
        %v1908 = vld [vmem:[%s1904 + $0xc] sm:$0xf]
        %v1909 = vld [vmem:[%s1904 + $0x10] sm:$0xf]
        %v1910 = vld [vmem:[%s1904 + $0x14] sm:$0xf]
        %v1911 = vld [vmem:[%s1904 + $0x18] sm:$0xf]
        %v1912 = vld [vmem:[%s1904 + $0x1c] sm:$0xf]
        %v1913 = vpack.c.bf16 %v1876, %v1872
        %v1914 = vpack.c.bf16 %v1877, %v1873
        %v1915 = vpack.c.bf16 %v1878, %v1874
        %v1916 = vpack.c.bf16 %v1879, %v1875
        %v1917 = vpack.c.bf16 %v1884, %v1880
        %v1918 = vpack.c.bf16 %v1885, %v1881
        %v1919 = vpack.c.bf16 %v1886, %v1882
        %v1920 = vpack.c.bf16 %v1887, %v1883
        %v1921 = vpack.c.bf16 %v1892, %v1888
        %v1922 = vpack.c.bf16 %v1893, %v1889
        %v1923 = vpack.c.bf16 %v1894, %v1890
        %v1924 = vpack.c.bf16 %v1895, %v1891
        %v1925 = vpack.c.bf16 %v1900, %v1896
        %v1926 = vpack.c.bf16 %v1901, %v1897
        %v1927 = vpack.c.bf16 %v1902, %v1898
        %v1928 = vpack.c.bf16 %v1903, %v1899
        %s1929 = scalar_lea.vmem %s3, 384
        %v1930 = vld [vmem:[%s1929] sm:$0xff]
        %v1931 = vld [vmem:[%s1929 + $0x8] sm:$0xff]
        %v1932 = vld [vmem:[%s1929 + $0x10] sm:$0xff]
        %v1933 = vld [vmem:[%s1929 + $0x18] sm:$0xff]
        %v1934 = vld [vmem:[%s1929 + $0x20] sm:$0xff]
        %v1935 = vld [vmem:[%s1929 + $0x28] sm:$0xff]
        %v1936 = vld [vmem:[%s1929 + $0x30] sm:$0xff]
        %v1937 = vld [vmem:[%s1929 + $0x38] sm:$0xff]
        %1939 = vset.pattern.permute.xlu0 0
        %1940 = vperm.xlu0 %1939, %v1930
        %v1941 = vpop.permute.xlu0 %1940
        %1944 = vset.pattern.permute.xlu0 0
        %1945 = vperm.xlu0 %1944, %v1931
        %v1946 = vpop.permute.xlu0 %1945
        %1949 = vset.pattern.permute.xlu0 0
        %1950 = vperm.xlu0 %1949, %v1932
        %v1951 = vpop.permute.xlu0 %1950
        %1954 = vset.pattern.permute.xlu0 0
        %1955 = vperm.xlu0 %1954, %v1933
        %v1956 = vpop.permute.xlu0 %1955
        %1959 = vset.pattern.permute.xlu0 0
        %1960 = vperm.xlu0 %1959, %v1934
        %v1961 = vpop.permute.xlu0 %1960
        %1964 = vset.pattern.permute.xlu0 0
        %1965 = vperm.xlu0 %1964, %v1935
        %v1966 = vpop.permute.xlu0 %1965
        %1969 = vset.pattern.permute.xlu0 0
        %1970 = vperm.xlu0 %1969, %v1936
        %v1971 = vpop.permute.xlu0 %1970
        %1974 = vset.pattern.permute.xlu0 0
        %1975 = vperm.xlu0 %1974, %v1937
        %v1976 = vpop.permute.xlu0 %1975
        %v1986 = vunpack.c.l.b16 %v1905
        %v1987 = vunpack.c.l.b16 %v1906
        %v1988 = vunpack.c.l.b16 %v1907
        %v1989 = vunpack.c.l.b16 %v1908
        %v1990 = vunpack.c.l.b16 %v1909
        %v1991 = vunpack.c.l.b16 %v1910
        %v1992 = vunpack.c.l.b16 %v1911
        %v1993 = vunpack.c.l.b16 %v1912
        %v1994 = vpack.c.b16 %v1987, %v1986
        %v1995 = vpack.c.b16 %v1989, %v1988
        %v1996 = vpack.c.b16 %v1991, %v1990
        %v1997 = vpack.c.b16 %v1993, %v1992
        %v1999 = vsel %vm631, %v1994, 0
        %v2002 = vsel %vm631, %v1995, 0
        %v2005 = vsel %vm631, %v1996, 0
        %v2008 = vsel %vm631, %v1997, 0
        %2010 = vmatpush.bf16.msra.mxu0 0
        %2011 = vmatpush.bf16.msra.mxu0 0
        %2012 = vmatpush.bf16.msra.mxu0 0
        %2013 = vmatpush.bf16.msra.mxu0 0
        %2014 = vmatpush.bf16.msra.mxu0 %v1925
        %2015 = vmatpush.bf16.msra.mxu0 %v1921
        %2016 = vmatpush.bf16.msra.mxu0 %v1917
        %2017 = vmatpush.bf16.msra.mxu0 %v1913
        %2018 = vmatmul.bf16.gmra.mxu0 %v1999
        %v2019 = vpop.f32.mrf.mxu0
        %v2020 = vadd.f32 %v1941, %v2019
        %v2021 = vpop.f32.mrf.mxu0
        %v2022 = vadd.f32 %v1946, %v2021
        %2023 = vmatmul.bf16.gmra.mxu0 %v2002
        %v2024 = vpop.f32.mrf.mxu0
        %v2025 = vadd.f32 %v1951, %v2024
        %v2026 = vpop.f32.mrf.mxu0
        %v2027 = vadd.f32 %v1956, %v2026
        %2028 = vmatmul.bf16.gmra.mxu0 %v2005
        %v2029 = vpop.f32.mrf.mxu0
        %v2030 = vadd.f32 %v1961, %v2029
        %v2031 = vpop.f32.mrf.mxu0
        %v2032 = vadd.f32 %v1966, %v2031
        %2033 = vmatmul.bf16.gmra.mxu0 %v2008
        %v2034 = vpop.f32.mrf.mxu0
        %v2035 = vadd.f32 %v1971, %v2034
        %v2036 = vpop.f32.mrf.mxu0
        %v2037 = vadd.f32 %v1976, %v2036
        %2038 = vdwg.mxu0
        %2039 = vmatpush.bf16.msra.mxu0 0
        %2040 = vmatpush.bf16.msra.mxu0 0
        %2041 = vmatpush.bf16.msra.mxu0 0
        %2042 = vmatpush.bf16.msra.mxu0 0
        %2043 = vmatpush.bf16.msra.mxu0 %v1926
        %2044 = vmatpush.bf16.msra.mxu0 %v1922
        %2045 = vmatpush.bf16.msra.mxu0 %v1918
        %2046 = vmatpush.bf16.msra.mxu0 %v1914
        %2047 = vmatmul.bf16.gmra.mxu0 %v1999
        %v2048 = vpop.f32.mrf.mxu0
        %v2049 = vadd.f32 %v1941, %v2048
        %v2050 = vpop.f32.mrf.mxu0
        %v2051 = vadd.f32 %v1946, %v2050
        %2052 = vmatmul.bf16.gmra.mxu0 %v2002
        %v2053 = vpop.f32.mrf.mxu0
        %v2054 = vadd.f32 %v1951, %v2053
        %v2055 = vpop.f32.mrf.mxu0
        %v2056 = vadd.f32 %v1956, %v2055
        %2057 = vmatmul.bf16.gmra.mxu0 %v2005
        %v2058 = vpop.f32.mrf.mxu0
        %v2059 = vadd.f32 %v1961, %v2058
        %v2060 = vpop.f32.mrf.mxu0
        %v2061 = vadd.f32 %v1966, %v2060
        %2062 = vmatmul.bf16.gmra.mxu0 %v2008
        %v2063 = vpop.f32.mrf.mxu0
        %v2064 = vadd.f32 %v1971, %v2063
        %v2065 = vpop.f32.mrf.mxu0
        %v2066 = vadd.f32 %v1976, %v2065
        %2067 = vdwg.mxu0
        %2068 = vmatpush.bf16.msra.mxu0 0
        %2069 = vmatpush.bf16.msra.mxu0 0
        %2070 = vmatpush.bf16.msra.mxu0 0
        %2071 = vmatpush.bf16.msra.mxu0 0
        %2072 = vmatpush.bf16.msra.mxu0 %v1927
        %2073 = vmatpush.bf16.msra.mxu0 %v1923
        %2074 = vmatpush.bf16.msra.mxu0 %v1919
        %2075 = vmatpush.bf16.msra.mxu0 %v1915
        %2076 = vmatmul.bf16.gmra.mxu0 %v1999
        %v2077 = vpop.f32.mrf.mxu0
        %v2078 = vadd.f32 %v1941, %v2077
        %v2079 = vpop.f32.mrf.mxu0
        %v2080 = vadd.f32 %v1946, %v2079
        %2081 = vmatmul.bf16.gmra.mxu0 %v2002
        %v2082 = vpop.f32.mrf.mxu0
        %v2083 = vadd.f32 %v1951, %v2082
        %v2084 = vpop.f32.mrf.mxu0
        %v2085 = vadd.f32 %v1956, %v2084
        %2086 = vmatmul.bf16.gmra.mxu0 %v2005
        %v2087 = vpop.f32.mrf.mxu0
        %v2088 = vadd.f32 %v1961, %v2087
        %v2089 = vpop.f32.mrf.mxu0
        %v2090 = vadd.f32 %v1966, %v2089
        %2091 = vmatmul.bf16.gmra.mxu0 %v2008
        %v2092 = vpop.f32.mrf.mxu0
        %v2093 = vadd.f32 %v1971, %v2092
        %v2094 = vpop.f32.mrf.mxu0
        %v2095 = vadd.f32 %v1976, %v2094
        %2096 = vdwg.mxu0
        %2097 = vmatpush.bf16.msra.mxu0 0
        %2098 = vmatpush.bf16.msra.mxu0 0
        %2099 = vmatpush.bf16.msra.mxu0 0
        %2100 = vmatpush.bf16.msra.mxu0 0
        %2101 = vmatpush.bf16.msra.mxu0 %v1928
        %2102 = vmatpush.bf16.msra.mxu0 %v1924
        %2103 = vmatpush.bf16.msra.mxu0 %v1920
        %2104 = vmatpush.bf16.msra.mxu0 %v1916
        %2105 = vmatmul.bf16.gmra.mxu0 %v1999
        %v2106 = vpop.f32.mrf.mxu0
        %v2107 = vadd.f32 %v1941, %v2106
        %v2108 = vpop.f32.mrf.mxu0
        %v2109 = vadd.f32 %v1946, %v2108
        %2110 = vmatmul.bf16.gmra.mxu0 %v2002
        %v2111 = vpop.f32.mrf.mxu0
        %v2112 = vadd.f32 %v1951, %v2111
        %v2113 = vpop.f32.mrf.mxu0
        %v2114 = vadd.f32 %v1956, %v2113
        %2115 = vmatmul.bf16.gmra.mxu0 %v2005
        %v2116 = vpop.f32.mrf.mxu0
        %v2117 = vadd.f32 %v1961, %v2116
        %v2118 = vpop.f32.mrf.mxu0
        %v2119 = vadd.f32 %v1966, %v2118
        %2120 = vmatmul.bf16.gmra.mxu0 %v2008
        %v2121 = vpop.f32.mrf.mxu0
        %v2122 = vadd.f32 %v1971, %v2121
        %v2123 = vpop.f32.mrf.mxu0
        %v2124 = vadd.f32 %v1976, %v2123
        %2125 = vdwg.mxu0
        %v2126 = vmul.f32 %v2020, 0.01
        %v2127 = vmul.f32 %v2049, 0.01
        %v2128 = vmul.f32 %v2078, 0.01
        %v2129 = vmul.f32 %v2107, 0.01
        %v2130 = vmul.f32 %v2022, 0.01
        %v2131 = vmul.f32 %v2051, 0.01
        %v2132 = vmul.f32 %v2080, 0.01
        %v2133 = vmul.f32 %v2109, 0.01
        %v2134 = vmul.f32 %v2025, 0.01
        %v2135 = vmul.f32 %v2054, 0.01
        %v2136 = vmul.f32 %v2083, 0.01
        %v2137 = vmul.f32 %v2112, 0.01
        %v2138 = vmul.f32 %v2027, 0.01
        %v2139 = vmul.f32 %v2056, 0.01
        %v2140 = vmul.f32 %v2085, 0.01
        %v2141 = vmul.f32 %v2114, 0.01
        %v2142 = vmul.f32 %v2030, 0.01
        %v2143 = vmul.f32 %v2059, 0.01
        %v2144 = vmul.f32 %v2088, 0.01
        %v2145 = vmul.f32 %v2117, 0.01
        %v2146 = vmul.f32 %v2032, 0.01
        %v2147 = vmul.f32 %v2061, 0.01
        %v2148 = vmul.f32 %v2090, 0.01
        %v2149 = vmul.f32 %v2119, 0.01
        %v2150 = vmul.f32 %v2035, 0.01
        %v2151 = vmul.f32 %v2064, 0.01
        %v2152 = vmul.f32 %v2093, 0.01
        %v2153 = vmul.f32 %v2122, 0.01
        %v2154 = vmul.f32 %v2037, 0.01
        %v2155 = vmul.f32 %v2066, 0.01
        %v2156 = vmul.f32 %v2095, 0.01
        %v2157 = vmul.f32 %v2124, 0.01
        %v2158 = vmax.f32 %v2020, %v2126
        %v2159 = vmax.f32 %v2049, %v2127
        %v2160 = vmax.f32 %v2078, %v2128
        %v2161 = vmax.f32 %v2107, %v2129
        %v2162 = vmax.f32 %v2022, %v2130
        %v2163 = vmax.f32 %v2051, %v2131
        %v2164 = vmax.f32 %v2080, %v2132
        %v2165 = vmax.f32 %v2109, %v2133
        %v2166 = vmax.f32 %v2025, %v2134
        %v2167 = vmax.f32 %v2054, %v2135
        %v2168 = vmax.f32 %v2083, %v2136
        %v2169 = vmax.f32 %v2112, %v2137
        %v2170 = vmax.f32 %v2027, %v2138
        %v2171 = vmax.f32 %v2056, %v2139
        %v2172 = vmax.f32 %v2085, %v2140
        %v2173 = vmax.f32 %v2114, %v2141
        %v2174 = vmax.f32 %v2030, %v2142
        %v2175 = vmax.f32 %v2059, %v2143
        %v2176 = vmax.f32 %v2088, %v2144
        %v2177 = vmax.f32 %v2117, %v2145
        %v2178 = vmax.f32 %v2032, %v2146
        %v2179 = vmax.f32 %v2061, %v2147
        %v2180 = vmax.f32 %v2090, %v2148
        %v2181 = vmax.f32 %v2119, %v2149
        %v2182 = vmax.f32 %v2035, %v2150
        %v2183 = vmax.f32 %v2064, %v2151
        %v2184 = vmax.f32 %v2093, %v2152
        %v2185 = vmax.f32 %v2122, %v2153
        %v2186 = vmax.f32 %v2037, %v2154
        %v2187 = vmax.f32 %v2066, %v2155
        %v2188 = vmax.f32 %v2095, %v2156
        %v2189 = vmax.f32 %v2124, %v2157
        %s2190 = scalar_lea.vmem %s2, 192
        %v2191 = vld [vmem:[%s2190] sm:$0xf]
        %v2192 = vld [vmem:[%s2190 + $0x4] sm:$0xf]
        %v2193 = vld [vmem:[%s2190 + $0x8] sm:$0xf]
        %v2194 = vld [vmem:[%s2190 + $0xc] sm:$0xf]
        %v2195 = vld [vmem:[%s2190 + $0x10] sm:$0xf]
        %v2196 = vld [vmem:[%s2190 + $0x14] sm:$0xf]
        %v2197 = vld [vmem:[%s2190 + $0x18] sm:$0xf]
        %v2198 = vld [vmem:[%s2190 + $0x1c] sm:$0xf]
        %v2199 = vpack.c.bf16 %v2162, %v2158
        %v2200 = vpack.c.bf16 %v2163, %v2159
        %v2201 = vpack.c.bf16 %v2164, %v2160
        %v2202 = vpack.c.bf16 %v2165, %v2161
        %v2203 = vpack.c.bf16 %v2170, %v2166
        %v2204 = vpack.c.bf16 %v2171, %v2167
        %v2205 = vpack.c.bf16 %v2172, %v2168
        %v2206 = vpack.c.bf16 %v2173, %v2169
        %v2207 = vpack.c.bf16 %v2178, %v2174
        %v2208 = vpack.c.bf16 %v2179, %v2175
        %v2209 = vpack.c.bf16 %v2180, %v2176
        %v2210 = vpack.c.bf16 %v2181, %v2177
        %v2211 = vpack.c.bf16 %v2186, %v2182
        %v2212 = vpack.c.bf16 %v2187, %v2183
        %v2213 = vpack.c.bf16 %v2188, %v2184
        %v2214 = vpack.c.bf16 %v2189, %v2185
        %s2215 = scalar_lea.vmem %s3, 448
        %v2216 = vld [vmem:[%s2215] sm:$0xff]
        %v2217 = vld [vmem:[%s2215 + $0x8] sm:$0xff]
        %v2218 = vld [vmem:[%s2215 + $0x10] sm:$0xff]
        %v2219 = vld [vmem:[%s2215 + $0x18] sm:$0xff]
        %v2220 = vld [vmem:[%s2215 + $0x20] sm:$0xff]
        %v2221 = vld [vmem:[%s2215 + $0x28] sm:$0xff]
        %v2222 = vld [vmem:[%s2215 + $0x30] sm:$0xff]
        %v2223 = vld [vmem:[%s2215 + $0x38] sm:$0xff]
        %2225 = vset.pattern.permute.xlu0 0
        %2226 = vperm.xlu0 %2225, %v2216
        %v2227 = vpop.permute.xlu0 %2226
        %2230 = vset.pattern.permute.xlu0 0
        %2231 = vperm.xlu0 %2230, %v2217
        %v2232 = vpop.permute.xlu0 %2231
        %2235 = vset.pattern.permute.xlu0 0
        %2236 = vperm.xlu0 %2235, %v2218
        %v2237 = vpop.permute.xlu0 %2236
        %2240 = vset.pattern.permute.xlu0 0
        %2241 = vperm.xlu0 %2240, %v2219
        %v2242 = vpop.permute.xlu0 %2241
        %2245 = vset.pattern.permute.xlu0 0
        %2246 = vperm.xlu0 %2245, %v2220
        %v2247 = vpop.permute.xlu0 %2246
        %2250 = vset.pattern.permute.xlu0 0
        %2251 = vperm.xlu0 %2250, %v2221
        %v2252 = vpop.permute.xlu0 %2251
        %2255 = vset.pattern.permute.xlu0 0
        %2256 = vperm.xlu0 %2255, %v2222
        %v2257 = vpop.permute.xlu0 %2256
        %2260 = vset.pattern.permute.xlu0 0
        %2261 = vperm.xlu0 %2260, %v2223
        %v2262 = vpop.permute.xlu0 %2261
        %v2272 = vunpack.c.l.b16 %v2191
        %v2273 = vunpack.c.l.b16 %v2192
        %v2274 = vunpack.c.l.b16 %v2193
        %v2275 = vunpack.c.l.b16 %v2194
        %v2276 = vunpack.c.l.b16 %v2195
        %v2277 = vunpack.c.l.b16 %v2196
        %v2278 = vunpack.c.l.b16 %v2197
        %v2279 = vunpack.c.l.b16 %v2198
        %v2280 = vpack.c.b16 %v2273, %v2272
        %v2281 = vpack.c.b16 %v2275, %v2274
        %v2282 = vpack.c.b16 %v2277, %v2276
        %v2283 = vpack.c.b16 %v2279, %v2278
        %v2285 = vsel %vm631, %v2280, 0
        %v2288 = vsel %vm631, %v2281, 0
        %v2291 = vsel %vm631, %v2282, 0
        %v2294 = vsel %vm631, %v2283, 0
        %2296 = vmatpush.bf16.msra.mxu0 0
        %2297 = vmatpush.bf16.msra.mxu0 0
        %2298 = vmatpush.bf16.msra.mxu0 0
        %2299 = vmatpush.bf16.msra.mxu0 0
        %2300 = vmatpush.bf16.msra.mxu0 %v2211
        %2301 = vmatpush.bf16.msra.mxu0 %v2207
        %2302 = vmatpush.bf16.msra.mxu0 %v2203
        %2303 = vmatpush.bf16.msra.mxu0 %v2199
        %2304 = vmatmul.bf16.gmra.mxu0 %v2285
        %v2305 = vpop.f32.mrf.mxu0
        %v2306 = vadd.f32 %v2227, %v2305
        %v2307 = vpop.f32.mrf.mxu0
        %v2308 = vadd.f32 %v2232, %v2307
        %2309 = vmatmul.bf16.gmra.mxu0 %v2288
        %v2310 = vpop.f32.mrf.mxu0
        %v2311 = vadd.f32 %v2237, %v2310
        %v2312 = vpop.f32.mrf.mxu0
        %v2313 = vadd.f32 %v2242, %v2312
        %2314 = vmatmul.bf16.gmra.mxu0 %v2291
        %v2315 = vpop.f32.mrf.mxu0
        %v2316 = vadd.f32 %v2247, %v2315
        %v2317 = vpop.f32.mrf.mxu0
        %v2318 = vadd.f32 %v2252, %v2317
        %2319 = vmatmul.bf16.gmra.mxu0 %v2294
        %v2320 = vpop.f32.mrf.mxu0
        %v2321 = vadd.f32 %v2257, %v2320
        %v2322 = vpop.f32.mrf.mxu0
        %v2323 = vadd.f32 %v2262, %v2322
        %2324 = vdwg.mxu0
        %2325 = vmatpush.bf16.msra.mxu0 0
        %2326 = vmatpush.bf16.msra.mxu0 0
        %2327 = vmatpush.bf16.msra.mxu0 0
        %2328 = vmatpush.bf16.msra.mxu0 0
        %2329 = vmatpush.bf16.msra.mxu0 %v2212
        %2330 = vmatpush.bf16.msra.mxu0 %v2208
        %2331 = vmatpush.bf16.msra.mxu0 %v2204
        %2332 = vmatpush.bf16.msra.mxu0 %v2200
        %2333 = vmatmul.bf16.gmra.mxu0 %v2285
        %v2334 = vpop.f32.mrf.mxu0
        %v2335 = vadd.f32 %v2227, %v2334
        %v2336 = vpop.f32.mrf.mxu0
        %v2337 = vadd.f32 %v2232, %v2336
        %2338 = vmatmul.bf16.gmra.mxu0 %v2288
        %v2339 = vpop.f32.mrf.mxu0
        %v2340 = vadd.f32 %v2237, %v2339
        %v2341 = vpop.f32.mrf.mxu0
        %v2342 = vadd.f32 %v2242, %v2341
        %2343 = vmatmul.bf16.gmra.mxu0 %v2291
        %v2344 = vpop.f32.mrf.mxu0
        %v2345 = vadd.f32 %v2247, %v2344
        %v2346 = vpop.f32.mrf.mxu0
        %v2347 = vadd.f32 %v2252, %v2346
        %2348 = vmatmul.bf16.gmra.mxu0 %v2294
        %v2349 = vpop.f32.mrf.mxu0
        %v2350 = vadd.f32 %v2257, %v2349
        %v2351 = vpop.f32.mrf.mxu0
        %v2352 = vadd.f32 %v2262, %v2351
        %2353 = vdwg.mxu0
        %2354 = vmatpush.bf16.msra.mxu0 0
        %2355 = vmatpush.bf16.msra.mxu0 0
        %2356 = vmatpush.bf16.msra.mxu0 0
        %2357 = vmatpush.bf16.msra.mxu0 0
        %2358 = vmatpush.bf16.msra.mxu0 %v2213
        %2359 = vmatpush.bf16.msra.mxu0 %v2209
        %2360 = vmatpush.bf16.msra.mxu0 %v2205
        %2361 = vmatpush.bf16.msra.mxu0 %v2201
        %2362 = vmatmul.bf16.gmra.mxu0 %v2285
        %v2363 = vpop.f32.mrf.mxu0
        %v2364 = vadd.f32 %v2227, %v2363
        %v2365 = vpop.f32.mrf.mxu0
        %v2366 = vadd.f32 %v2232, %v2365
        %2367 = vmatmul.bf16.gmra.mxu0 %v2288
        %v2368 = vpop.f32.mrf.mxu0
        %v2369 = vadd.f32 %v2237, %v2368
        %v2370 = vpop.f32.mrf.mxu0
        %v2371 = vadd.f32 %v2242, %v2370
        %2372 = vmatmul.bf16.gmra.mxu0 %v2291
        %v2373 = vpop.f32.mrf.mxu0
        %v2374 = vadd.f32 %v2247, %v2373
        %v2375 = vpop.f32.mrf.mxu0
        %v2376 = vadd.f32 %v2252, %v2375
        %2377 = vmatmul.bf16.gmra.mxu0 %v2294
        %v2378 = vpop.f32.mrf.mxu0
        %v2379 = vadd.f32 %v2257, %v2378
        %v2380 = vpop.f32.mrf.mxu0
        %v2381 = vadd.f32 %v2262, %v2380
        %2382 = vdwg.mxu0
        %2383 = vmatpush.bf16.msra.mxu0 0
        %2384 = vmatpush.bf16.msra.mxu0 0
        %2385 = vmatpush.bf16.msra.mxu0 0
        %2386 = vmatpush.bf16.msra.mxu0 0
        %2387 = vmatpush.bf16.msra.mxu0 %v2214
        %2388 = vmatpush.bf16.msra.mxu0 %v2210
        %2389 = vmatpush.bf16.msra.mxu0 %v2206
        %2390 = vmatpush.bf16.msra.mxu0 %v2202
        %2391 = vmatmul.bf16.gmra.mxu0 %v2285
        %v2392 = vpop.f32.mrf.mxu0
        %v2393 = vadd.f32 %v2227, %v2392
        %v2394 = vpop.f32.mrf.mxu0
        %v2395 = vadd.f32 %v2232, %v2394
        %2396 = vmatmul.bf16.gmra.mxu0 %v2288
        %v2397 = vpop.f32.mrf.mxu0
        %v2398 = vadd.f32 %v2237, %v2397
        %v2399 = vpop.f32.mrf.mxu0
        %v2400 = vadd.f32 %v2242, %v2399
        %2401 = vmatmul.bf16.gmra.mxu0 %v2291
        %v2402 = vpop.f32.mrf.mxu0
        %v2403 = vadd.f32 %v2247, %v2402
        %v2404 = vpop.f32.mrf.mxu0
        %v2405 = vadd.f32 %v2252, %v2404
        %2406 = vmatmul.bf16.gmra.mxu0 %v2294
        %v2407 = vpop.f32.mrf.mxu0
        %v2408 = vadd.f32 %v2257, %v2407
        %v2409 = vpop.f32.mrf.mxu0
        %v2410 = vadd.f32 %v2262, %v2409
        %2411 = vdwg.mxu0
        %v2412 = vmul.f32 %v2306, 0.01
        %v2413 = vmul.f32 %v2335, 0.01
        %v2414 = vmul.f32 %v2364, 0.01
        %v2415 = vmul.f32 %v2393, 0.01
        %v2416 = vmul.f32 %v2308, 0.01
        %v2417 = vmul.f32 %v2337, 0.01
        %v2418 = vmul.f32 %v2366, 0.01
        %v2419 = vmul.f32 %v2395, 0.01
        %v2420 = vmul.f32 %v2311, 0.01
        %v2421 = vmul.f32 %v2340, 0.01
        %v2422 = vmul.f32 %v2369, 0.01
        %v2423 = vmul.f32 %v2398, 0.01
        %v2424 = vmul.f32 %v2313, 0.01
        %v2425 = vmul.f32 %v2342, 0.01
        %v2426 = vmul.f32 %v2371, 0.01
        %v2427 = vmul.f32 %v2400, 0.01
        %v2428 = vmul.f32 %v2316, 0.01
        %v2429 = vmul.f32 %v2345, 0.01
        %v2430 = vmul.f32 %v2374, 0.01
        %v2431 = vmul.f32 %v2403, 0.01
        %v2432 = vmul.f32 %v2318, 0.01
        %v2433 = vmul.f32 %v2347, 0.01
        %v2434 = vmul.f32 %v2376, 0.01
        %v2435 = vmul.f32 %v2405, 0.01
        %v2436 = vmul.f32 %v2321, 0.01
        %v2437 = vmul.f32 %v2350, 0.01
        %v2438 = vmul.f32 %v2379, 0.01
        %v2439 = vmul.f32 %v2408, 0.01
        %v2440 = vmul.f32 %v2323, 0.01
        %v2441 = vmul.f32 %v2352, 0.01
        %v2442 = vmul.f32 %v2381, 0.01
        %v2443 = vmul.f32 %v2410, 0.01
        %v2444 = vmax.f32 %v2306, %v2412
        %v2445 = vmax.f32 %v2335, %v2413
        %v2446 = vmax.f32 %v2364, %v2414
        %v2447 = vmax.f32 %v2393, %v2415
        %v2448 = vmax.f32 %v2308, %v2416
        %v2449 = vmax.f32 %v2337, %v2417
        %v2450 = vmax.f32 %v2366, %v2418
        %v2451 = vmax.f32 %v2395, %v2419
        %v2452 = vmax.f32 %v2311, %v2420
        %v2453 = vmax.f32 %v2340, %v2421
        %v2454 = vmax.f32 %v2369, %v2422
        %v2455 = vmax.f32 %v2398, %v2423
        %v2456 = vmax.f32 %v2313, %v2424
        %v2457 = vmax.f32 %v2342, %v2425
        %v2458 = vmax.f32 %v2371, %v2426
        %v2459 = vmax.f32 %v2400, %v2427
        %v2460 = vmax.f32 %v2316, %v2428
        %v2461 = vmax.f32 %v2345, %v2429
        %v2462 = vmax.f32 %v2374, %v2430
        %v2463 = vmax.f32 %v2403, %v2431
        %v2464 = vmax.f32 %v2318, %v2432
        %v2465 = vmax.f32 %v2347, %v2433
        %v2466 = vmax.f32 %v2376, %v2434
        %v2467 = vmax.f32 %v2405, %v2435
        %v2468 = vmax.f32 %v2321, %v2436
        %v2469 = vmax.f32 %v2350, %v2437
        %v2470 = vmax.f32 %v2379, %v2438
        %v2471 = vmax.f32 %v2408, %v2439
        %v2472 = vmax.f32 %v2323, %v2440
        %v2473 = vmax.f32 %v2352, %v2441
        %v2474 = vmax.f32 %v2381, %v2442
        %v2475 = vmax.f32 %v2410, %v2443
        %s2476 = scalar_lea.vmem %s2, 224
        %v2477 = vld [vmem:[%s2476] sm:$0xf]
        %v2478 = vld [vmem:[%s2476 + $0x4] sm:$0xf]
        %v2479 = vld [vmem:[%s2476 + $0x8] sm:$0xf]
        %v2480 = vld [vmem:[%s2476 + $0xc] sm:$0xf]
        %v2481 = vld [vmem:[%s2476 + $0x10] sm:$0xf]
        %v2482 = vld [vmem:[%s2476 + $0x14] sm:$0xf]
        %v2483 = vld [vmem:[%s2476 + $0x18] sm:$0xf]
        %v2484 = vld [vmem:[%s2476 + $0x1c] sm:$0xf]
        %v2485 = vpack.c.bf16 %v2448, %v2444
        %v2486 = vpack.c.bf16 %v2449, %v2445
        %v2487 = vpack.c.bf16 %v2450, %v2446
        %v2488 = vpack.c.bf16 %v2451, %v2447
        %v2489 = vpack.c.bf16 %v2456, %v2452
        %v2490 = vpack.c.bf16 %v2457, %v2453
        %v2491 = vpack.c.bf16 %v2458, %v2454
        %v2492 = vpack.c.bf16 %v2459, %v2455
        %v2493 = vpack.c.bf16 %v2464, %v2460
        %v2494 = vpack.c.bf16 %v2465, %v2461
        %v2495 = vpack.c.bf16 %v2466, %v2462
        %v2496 = vpack.c.bf16 %v2467, %v2463
        %v2497 = vpack.c.bf16 %v2472, %v2468
        %v2498 = vpack.c.bf16 %v2473, %v2469
        %v2499 = vpack.c.bf16 %v2474, %v2470
        %v2500 = vpack.c.bf16 %v2475, %v2471
        %s2501 = scalar_lea.vmem %s3, 512
        %v2502 = vld [vmem:[%s2501] sm:$0xff]
        %v2503 = vld [vmem:[%s2501 + $0x8] sm:$0xff]
        %v2504 = vld [vmem:[%s2501 + $0x10] sm:$0xff]
        %v2505 = vld [vmem:[%s2501 + $0x18] sm:$0xff]
        %v2506 = vld [vmem:[%s2501 + $0x20] sm:$0xff]
        %v2507 = vld [vmem:[%s2501 + $0x28] sm:$0xff]
        %v2508 = vld [vmem:[%s2501 + $0x30] sm:$0xff]
        %v2509 = vld [vmem:[%s2501 + $0x38] sm:$0xff]
        %2511 = vset.pattern.permute.xlu0 0
        %2512 = vperm.xlu0 %2511, %v2502
        %v2513 = vpop.permute.xlu0 %2512
        %2516 = vset.pattern.permute.xlu0 0
        %2517 = vperm.xlu0 %2516, %v2503
        %v2518 = vpop.permute.xlu0 %2517
        %2521 = vset.pattern.permute.xlu0 0
        %2522 = vperm.xlu0 %2521, %v2504
        %v2523 = vpop.permute.xlu0 %2522
        %2526 = vset.pattern.permute.xlu0 0
        %2527 = vperm.xlu0 %2526, %v2505
        %v2528 = vpop.permute.xlu0 %2527
        %2531 = vset.pattern.permute.xlu0 0
        %2532 = vperm.xlu0 %2531, %v2506
        %v2533 = vpop.permute.xlu0 %2532
        %2536 = vset.pattern.permute.xlu0 0
        %2537 = vperm.xlu0 %2536, %v2507
        %v2538 = vpop.permute.xlu0 %2537
        %2541 = vset.pattern.permute.xlu0 0
        %2542 = vperm.xlu0 %2541, %v2508
        %v2543 = vpop.permute.xlu0 %2542
        %2546 = vset.pattern.permute.xlu0 0
        %2547 = vperm.xlu0 %2546, %v2509
        %v2548 = vpop.permute.xlu0 %2547
        %v2558 = vunpack.c.l.b16 %v2477
        %v2559 = vunpack.c.l.b16 %v2478
        %v2560 = vunpack.c.l.b16 %v2479
        %v2561 = vunpack.c.l.b16 %v2480
        %v2562 = vunpack.c.l.b16 %v2481
        %v2563 = vunpack.c.l.b16 %v2482
        %v2564 = vunpack.c.l.b16 %v2483
        %v2565 = vunpack.c.l.b16 %v2484
        %v2566 = vpack.c.b16 %v2559, %v2558
        %v2567 = vpack.c.b16 %v2561, %v2560
        %v2568 = vpack.c.b16 %v2563, %v2562
        %v2569 = vpack.c.b16 %v2565, %v2564
        %v2571 = vsel %vm631, %v2566, 0
        %v2574 = vsel %vm631, %v2567, 0
        %v2577 = vsel %vm631, %v2568, 0
        %v2580 = vsel %vm631, %v2569, 0
        %2582 = vmatpush.bf16.msra.mxu0 0
        %2583 = vmatpush.bf16.msra.mxu0 0
        %2584 = vmatpush.bf16.msra.mxu0 0
        %2585 = vmatpush.bf16.msra.mxu0 0
        %2586 = vmatpush.bf16.msra.mxu0 %v2497
        %2587 = vmatpush.bf16.msra.mxu0 %v2493
        %2588 = vmatpush.bf16.msra.mxu0 %v2489
        %2589 = vmatpush.bf16.msra.mxu0 %v2485
        %2590 = vmatmul.bf16.gmra.mxu0 %v2571
        %v2591 = vpop.f32.mrf.mxu0
        %v2592 = vadd.f32 %v2513, %v2591
        %v2593 = vpop.f32.mrf.mxu0
        %v2594 = vadd.f32 %v2518, %v2593
        %2595 = vmatmul.bf16.gmra.mxu0 %v2574
        %v2596 = vpop.f32.mrf.mxu0
        %v2597 = vadd.f32 %v2523, %v2596
        %v2598 = vpop.f32.mrf.mxu0
        %v2599 = vadd.f32 %v2528, %v2598
        %2600 = vmatmul.bf16.gmra.mxu0 %v2577
        %v2601 = vpop.f32.mrf.mxu0
        %v2602 = vadd.f32 %v2533, %v2601
        %v2603 = vpop.f32.mrf.mxu0
        %v2604 = vadd.f32 %v2538, %v2603
        %2605 = vmatmul.bf16.gmra.mxu0 %v2580
        %v2606 = vpop.f32.mrf.mxu0
        %v2607 = vadd.f32 %v2543, %v2606
        %v2608 = vpop.f32.mrf.mxu0
        %v2609 = vadd.f32 %v2548, %v2608
        %2610 = vdwg.mxu0
        %2611 = vmatpush.bf16.msra.mxu0 0
        %2612 = vmatpush.bf16.msra.mxu0 0
        %2613 = vmatpush.bf16.msra.mxu0 0
        %2614 = vmatpush.bf16.msra.mxu0 0
        %2615 = vmatpush.bf16.msra.mxu0 %v2498
        %2616 = vmatpush.bf16.msra.mxu0 %v2494
        %2617 = vmatpush.bf16.msra.mxu0 %v2490
        %2618 = vmatpush.bf16.msra.mxu0 %v2486
        %2619 = vmatmul.bf16.gmra.mxu0 %v2571
        %v2620 = vpop.f32.mrf.mxu0
        %v2621 = vadd.f32 %v2513, %v2620
        %v2622 = vpop.f32.mrf.mxu0
        %v2623 = vadd.f32 %v2518, %v2622
        %2624 = vmatmul.bf16.gmra.mxu0 %v2574
        %v2625 = vpop.f32.mrf.mxu0
        %v2626 = vadd.f32 %v2523, %v2625
        %v2627 = vpop.f32.mrf.mxu0
        %v2628 = vadd.f32 %v2528, %v2627
        %2629 = vmatmul.bf16.gmra.mxu0 %v2577
        %v2630 = vpop.f32.mrf.mxu0
        %v2631 = vadd.f32 %v2533, %v2630
        %v2632 = vpop.f32.mrf.mxu0
        %v2633 = vadd.f32 %v2538, %v2632
        %2634 = vmatmul.bf16.gmra.mxu0 %v2580
        %v2635 = vpop.f32.mrf.mxu0
        %v2636 = vadd.f32 %v2543, %v2635
        %v2637 = vpop.f32.mrf.mxu0
        %v2638 = vadd.f32 %v2548, %v2637
        %2639 = vdwg.mxu0
        %2640 = vmatpush.bf16.msra.mxu0 0
        %2641 = vmatpush.bf16.msra.mxu0 0
        %2642 = vmatpush.bf16.msra.mxu0 0
        %2643 = vmatpush.bf16.msra.mxu0 0
        %2644 = vmatpush.bf16.msra.mxu0 %v2499
        %2645 = vmatpush.bf16.msra.mxu0 %v2495
        %2646 = vmatpush.bf16.msra.mxu0 %v2491
        %2647 = vmatpush.bf16.msra.mxu0 %v2487
        %2648 = vmatmul.bf16.gmra.mxu0 %v2571
        %v2649 = vpop.f32.mrf.mxu0
        %v2650 = vadd.f32 %v2513, %v2649
        %v2651 = vpop.f32.mrf.mxu0
        %v2652 = vadd.f32 %v2518, %v2651
        %2653 = vmatmul.bf16.gmra.mxu0 %v2574
        %v2654 = vpop.f32.mrf.mxu0
        %v2655 = vadd.f32 %v2523, %v2654
        %v2656 = vpop.f32.mrf.mxu0
        %v2657 = vadd.f32 %v2528, %v2656
        %2658 = vmatmul.bf16.gmra.mxu0 %v2577
        %v2659 = vpop.f32.mrf.mxu0
        %v2660 = vadd.f32 %v2533, %v2659
        %v2661 = vpop.f32.mrf.mxu0
        %v2662 = vadd.f32 %v2538, %v2661
        %2663 = vmatmul.bf16.gmra.mxu0 %v2580
        %v2664 = vpop.f32.mrf.mxu0
        %v2665 = vadd.f32 %v2543, %v2664
        %v2666 = vpop.f32.mrf.mxu0
        %v2667 = vadd.f32 %v2548, %v2666
        %2668 = vdwg.mxu0
        %2669 = vmatpush.bf16.msra.mxu0 0
        %2670 = vmatpush.bf16.msra.mxu0 0
        %2671 = vmatpush.bf16.msra.mxu0 0
        %2672 = vmatpush.bf16.msra.mxu0 0
        %2673 = vmatpush.bf16.msra.mxu0 %v2500
        %2674 = vmatpush.bf16.msra.mxu0 %v2496
        %2675 = vmatpush.bf16.msra.mxu0 %v2492
        %2676 = vmatpush.bf16.msra.mxu0 %v2488
        %2677 = vmatmul.bf16.gmra.mxu0 %v2571
        %v2678 = vpop.f32.mrf.mxu0
        %v2679 = vadd.f32 %v2513, %v2678
        %v2680 = vpop.f32.mrf.mxu0
        %v2681 = vadd.f32 %v2518, %v2680
        %2682 = vmatmul.bf16.gmra.mxu0 %v2574
        %v2683 = vpop.f32.mrf.mxu0
        %v2684 = vadd.f32 %v2523, %v2683
        %v2685 = vpop.f32.mrf.mxu0
        %v2686 = vadd.f32 %v2528, %v2685
        %2687 = vmatmul.bf16.gmra.mxu0 %v2577
        %v2688 = vpop.f32.mrf.mxu0
        %v2689 = vadd.f32 %v2533, %v2688
        %v2690 = vpop.f32.mrf.mxu0
        %v2691 = vadd.f32 %v2538, %v2690
        %2692 = vmatmul.bf16.gmra.mxu0 %v2580
        %v2693 = vpop.f32.mrf.mxu0
        %v2694 = vadd.f32 %v2543, %v2693
        %v2695 = vpop.f32.mrf.mxu0
        %v2696 = vadd.f32 %v2548, %v2695
        %2697 = vdwg.mxu0
        %v2698 = vmul.f32 %v2592, 0.01
        %v2699 = vmul.f32 %v2621, 0.01
        %v2700 = vmul.f32 %v2650, 0.01
        %v2701 = vmul.f32 %v2679, 0.01
        %v2702 = vmul.f32 %v2594, 0.01
        %v2703 = vmul.f32 %v2623, 0.01
        %v2704 = vmul.f32 %v2652, 0.01
        %v2705 = vmul.f32 %v2681, 0.01
        %v2706 = vmul.f32 %v2597, 0.01
        %v2707 = vmul.f32 %v2626, 0.01
        %v2708 = vmul.f32 %v2655, 0.01
        %v2709 = vmul.f32 %v2684, 0.01
        %v2710 = vmul.f32 %v2599, 0.01
        %v2711 = vmul.f32 %v2628, 0.01
        %v2712 = vmul.f32 %v2657, 0.01
        %v2713 = vmul.f32 %v2686, 0.01
        %v2714 = vmul.f32 %v2602, 0.01
        %v2715 = vmul.f32 %v2631, 0.01
        %v2716 = vmul.f32 %v2660, 0.01
        %v2717 = vmul.f32 %v2689, 0.01
        %v2718 = vmul.f32 %v2604, 0.01
        %v2719 = vmul.f32 %v2633, 0.01
        %v2720 = vmul.f32 %v2662, 0.01
        %v2721 = vmul.f32 %v2691, 0.01
        %v2722 = vmul.f32 %v2607, 0.01
        %v2723 = vmul.f32 %v2636, 0.01
        %v2724 = vmul.f32 %v2665, 0.01
        %v2725 = vmul.f32 %v2694, 0.01
        %v2726 = vmul.f32 %v2609, 0.01
        %v2727 = vmul.f32 %v2638, 0.01
        %v2728 = vmul.f32 %v2667, 0.01
        %v2729 = vmul.f32 %v2696, 0.01
        %v2730 = vmax.f32 %v2592, %v2698
        %v2731 = vmax.f32 %v2621, %v2699
        %v2732 = vmax.f32 %v2650, %v2700
        %v2733 = vmax.f32 %v2679, %v2701
        %v2734 = vmax.f32 %v2594, %v2702
        %v2735 = vmax.f32 %v2623, %v2703
        %v2736 = vmax.f32 %v2652, %v2704
        %v2737 = vmax.f32 %v2681, %v2705
        %v2738 = vmax.f32 %v2597, %v2706
        %v2739 = vmax.f32 %v2626, %v2707
        %v2740 = vmax.f32 %v2655, %v2708
        %v2741 = vmax.f32 %v2684, %v2709
        %v2742 = vmax.f32 %v2599, %v2710
        %v2743 = vmax.f32 %v2628, %v2711
        %v2744 = vmax.f32 %v2657, %v2712
        %v2745 = vmax.f32 %v2686, %v2713
        %v2746 = vmax.f32 %v2602, %v2714
        %v2747 = vmax.f32 %v2631, %v2715
        %v2748 = vmax.f32 %v2660, %v2716
        %v2749 = vmax.f32 %v2689, %v2717
        %v2750 = vmax.f32 %v2604, %v2718
        %v2751 = vmax.f32 %v2633, %v2719
        %v2752 = vmax.f32 %v2662, %v2720
        %v2753 = vmax.f32 %v2691, %v2721
        %v2754 = vmax.f32 %v2607, %v2722
        %v2755 = vmax.f32 %v2636, %v2723
        %v2756 = vmax.f32 %v2665, %v2724
        %v2757 = vmax.f32 %v2694, %v2725
        %v2758 = vmax.f32 %v2609, %v2726
        %v2759 = vmax.f32 %v2638, %v2727
        %v2760 = vmax.f32 %v2667, %v2728
        %v2761 = vmax.f32 %v2696, %v2729
        %s2762 = scalar_lea.vmem %s2, 256
        %v2763 = vld [vmem:[%s2762] sm:$0xf]
        %v2764 = vld [vmem:[%s2762 + $0x4] sm:$0xf]
        %v2765 = vld [vmem:[%s2762 + $0x8] sm:$0xf]
        %v2766 = vld [vmem:[%s2762 + $0xc] sm:$0xf]
        %v2767 = vld [vmem:[%s2762 + $0x10] sm:$0xf]
        %v2768 = vld [vmem:[%s2762 + $0x14] sm:$0xf]
        %v2769 = vld [vmem:[%s2762 + $0x18] sm:$0xf]
        %v2770 = vld [vmem:[%s2762 + $0x1c] sm:$0xf]
        %v2771 = vpack.c.bf16 %v2734, %v2730
        %v2772 = vpack.c.bf16 %v2735, %v2731
        %v2773 = vpack.c.bf16 %v2736, %v2732
        %v2774 = vpack.c.bf16 %v2737, %v2733
        %v2775 = vpack.c.bf16 %v2742, %v2738
        %v2776 = vpack.c.bf16 %v2743, %v2739
        %v2777 = vpack.c.bf16 %v2744, %v2740
        %v2778 = vpack.c.bf16 %v2745, %v2741
        %v2779 = vpack.c.bf16 %v2750, %v2746
        %v2780 = vpack.c.bf16 %v2751, %v2747
        %v2781 = vpack.c.bf16 %v2752, %v2748
        %v2782 = vpack.c.bf16 %v2753, %v2749
        %v2783 = vpack.c.bf16 %v2758, %v2754
        %v2784 = vpack.c.bf16 %v2759, %v2755
        %v2785 = vpack.c.bf16 %v2760, %v2756
        %v2786 = vpack.c.bf16 %v2761, %v2757
        %s2787 = scalar_lea.vmem %s3, 576
        %v2788 = vld [vmem:[%s2787] sm:$0xff]
        %v2789 = vld [vmem:[%s2787 + $0x8] sm:$0xff]
        %v2790 = vld [vmem:[%s2787 + $0x10] sm:$0xff]
        %v2791 = vld [vmem:[%s2787 + $0x18] sm:$0xff]
        %v2792 = vld [vmem:[%s2787 + $0x20] sm:$0xff]
        %v2793 = vld [vmem:[%s2787 + $0x28] sm:$0xff]
        %v2794 = vld [vmem:[%s2787 + $0x30] sm:$0xff]
        %v2795 = vld [vmem:[%s2787 + $0x38] sm:$0xff]
        %2797 = vset.pattern.permute.xlu0 0
        %2798 = vperm.xlu0 %2797, %v2788
        %v2799 = vpop.permute.xlu0 %2798
        %2802 = vset.pattern.permute.xlu0 0
        %2803 = vperm.xlu0 %2802, %v2789
        %v2804 = vpop.permute.xlu0 %2803
        %2807 = vset.pattern.permute.xlu0 0
        %2808 = vperm.xlu0 %2807, %v2790
        %v2809 = vpop.permute.xlu0 %2808
        %2812 = vset.pattern.permute.xlu0 0
        %2813 = vperm.xlu0 %2812, %v2791
        %v2814 = vpop.permute.xlu0 %2813
        %2817 = vset.pattern.permute.xlu0 0
        %2818 = vperm.xlu0 %2817, %v2792
        %v2819 = vpop.permute.xlu0 %2818
        %2821 = vset.pattern.permute.xlu0 0
        %2822 = vperm.xlu0 %2821, %v2793
        %v2823 = vpop.permute.xlu0 %2822
        %2825 = vset.pattern.permute.xlu0 0
        %2826 = vperm.xlu0 %2825, %v2794
        %v2827 = vpop.permute.xlu0 %2826
        %2829 = vset.pattern.permute.xlu0 0
        %2830 = vperm.xlu0 %2829, %v2795
        %v2831 = vpop.permute.xlu0 %2830
        %v2840 = vunpack.c.l.b16 %v2763
        %v2841 = vunpack.c.l.b16 %v2764
        %v2842 = vunpack.c.l.b16 %v2765
        %v2843 = vunpack.c.l.b16 %v2766
        %v2844 = vunpack.c.l.b16 %v2767
        %v2845 = vunpack.c.l.b16 %v2768
        %v2846 = vunpack.c.l.b16 %v2769
        %v2847 = vunpack.c.l.b16 %v2770
        %v2848 = vpack.c.b16 %v2841, %v2840
        %v2849 = vpack.c.b16 %v2843, %v2842
        %v2850 = vpack.c.b16 %v2845, %v2844
        %v2851 = vpack.c.b16 %v2847, %v2846
        %v2853 = vsel %vm631, %v2848, 0
        %v2856 = vsel %vm631, %v2849, 0
        %v2859 = vsel %vm631, %v2850, 0
        %v2862 = vsel %vm631, %v2851, 0
        %2864 = vmatpush.bf16.msra.mxu0 0
        %2865 = vmatpush.bf16.msra.mxu0 0
        %2866 = vmatpush.bf16.msra.mxu0 0
        %2867 = vmatpush.bf16.msra.mxu0 0
        %2868 = vmatpush.bf16.msra.mxu0 %v2783
        %2869 = vmatpush.bf16.msra.mxu0 %v2779
        %2870 = vmatpush.bf16.msra.mxu0 %v2775
        %2871 = vmatpush.bf16.msra.mxu0 %v2771
        %2872 = vmatmul.bf16.gmra.mxu0 %v2853
        %v2873 = vpop.f32.mrf.mxu0
        %v2874 = vadd.f32 %v2799, %v2873
        %v2875 = vpop.f32.mrf.mxu0
        %v2876 = vadd.f32 %v2804, %v2875
        %2877 = vmatmul.bf16.gmra.mxu0 %v2856
        %v2878 = vpop.f32.mrf.mxu0
        %v2879 = vadd.f32 %v2809, %v2878
        %v2880 = vpop.f32.mrf.mxu0
        %v2881 = vadd.f32 %v2814, %v2880
        %2882 = vmatmul.bf16.gmra.mxu0 %v2859
        %v2883 = vpop.f32.mrf.mxu0
        %v2884 = vpop.f32.mrf.mxu0
        %2885 = vmatmul.bf16.gmra.mxu0 %v2862
        %v2886 = vpop.f32.mrf.mxu0
        %v2887 = vpop.f32.mrf.mxu0
        %2888 = vdwg.mxu0
        %2889 = vmatpush.bf16.msra.mxu0 0
        %2890 = vmatpush.bf16.msra.mxu0 0
        %2891 = vmatpush.bf16.msra.mxu0 0
        %2892 = vmatpush.bf16.msra.mxu0 0
        %2893 = vmatpush.bf16.msra.mxu0 %v2784
        %2894 = vmatpush.bf16.msra.mxu0 %v2780
        %2895 = vmatpush.bf16.msra.mxu0 %v2776
        %2896 = vmatpush.bf16.msra.mxu0 %v2772
        %2897 = vmatmul.bf16.gmra.mxu0 %v2853
        %v2898 = vpop.f32.mrf.mxu0
        %v2899 = vadd.f32 %v2799, %v2898
        %v2900 = vpop.f32.mrf.mxu0
        %v2901 = vadd.f32 %v2804, %v2900
        %2902 = vmatmul.bf16.gmra.mxu0 %v2856
        %v2903 = vpop.f32.mrf.mxu0
        %v2904 = vadd.f32 %v2809, %v2903
        %v2905 = vpop.f32.mrf.mxu0
        %v2906 = vadd.f32 %v2814, %v2905
        %2907 = vmatmul.bf16.gmra.mxu0 %v2859
        %v2908 = vpop.f32.mrf.mxu0
        %v2909 = vpop.f32.mrf.mxu0
        %2910 = vmatmul.bf16.gmra.mxu0 %v2862
        %v2911 = vpop.f32.mrf.mxu0
        %v2912 = vpop.f32.mrf.mxu0
        %2913 = vdwg.mxu0
        %2914 = vmatpush.bf16.msra.mxu0 0
        %2915 = vmatpush.bf16.msra.mxu0 0
        %2916 = vmatpush.bf16.msra.mxu0 0
        %2917 = vmatpush.bf16.msra.mxu0 0
        %2918 = vmatpush.bf16.msra.mxu0 %v2785
        %2919 = vmatpush.bf16.msra.mxu0 %v2781
        %2920 = vmatpush.bf16.msra.mxu0 %v2777
        %2921 = vmatpush.bf16.msra.mxu0 %v2773
        %2922 = vmatmul.bf16.gmra.mxu0 %v2853
        %v2923 = vpop.f32.mrf.mxu0
        %v2924 = vadd.f32 %v2799, %v2923
        %v2925 = vpop.f32.mrf.mxu0
        %v2926 = vadd.f32 %v2804, %v2925
        %2927 = vmatmul.bf16.gmra.mxu0 %v2856
        %v2928 = vpop.f32.mrf.mxu0
        %v2929 = vadd.f32 %v2809, %v2928
        %v2930 = vpop.f32.mrf.mxu0
        %v2931 = vadd.f32 %v2814, %v2930
        %2932 = vmatmul.bf16.gmra.mxu0 %v2859
        %v2933 = vpop.f32.mrf.mxu0
        %v2934 = vpop.f32.mrf.mxu0
        %2935 = vmatmul.bf16.gmra.mxu0 %v2862
        %v2936 = vpop.f32.mrf.mxu0
        %v2937 = vpop.f32.mrf.mxu0
        %2938 = vdwg.mxu0
        %2939 = vmatpush.bf16.msra.mxu0 0
        %2940 = vmatpush.bf16.msra.mxu0 0
        %2941 = vmatpush.bf16.msra.mxu0 0
        %2942 = vmatpush.bf16.msra.mxu0 0
        %2943 = vmatpush.bf16.msra.mxu0 %v2786
        %2944 = vmatpush.bf16.msra.mxu0 %v2782
        %2945 = vmatpush.bf16.msra.mxu0 %v2778
        %2946 = vmatpush.bf16.msra.mxu0 %v2774
        %2947 = vmatmul.bf16.gmra.mxu0 %v2853
        %v2948 = vpop.f32.mrf.mxu0
        %v2949 = vadd.f32 %v2799, %v2948
        %v2950 = vpop.f32.mrf.mxu0
        %v2951 = vadd.f32 %v2804, %v2950
        %2952 = vmatmul.bf16.gmra.mxu0 %v2856
        %v2953 = vpop.f32.mrf.mxu0
        %v2954 = vadd.f32 %v2809, %v2953
        %v2955 = vpop.f32.mrf.mxu0
        %v2956 = vadd.f32 %v2814, %v2955
        %2957 = vmatmul.bf16.gmra.mxu0 %v2859
        %v2958 = vpop.f32.mrf.mxu0
        %v2959 = vpop.f32.mrf.mxu0
        %2960 = vmatmul.bf16.gmra.mxu0 %v2862
        %v2961 = vpop.f32.mrf.mxu0
        %v2962 = vpop.f32.mrf.mxu0
        %2963 = vdwg.mxu0
        %2964 = vst [vmem:[%s241] sm:$0xff] %v2874
        %2965 = vst [vmem:[%s241 + $0x8] sm:$0xff] %v2899
        %2966 = vst [vmem:[%s241 + $0x10] sm:$0xff] %v2924
        %2967 = vst [vmem:[%s241 + $0x18] sm:$0xff] %v2949
        %2968 = vst [vmem:[%s241 + $0x20] sm:$0xff] %v2876
        %2969 = vst [vmem:[%s241 + $0x28] sm:$0xff] %v2901
        %2970 = vst [vmem:[%s241 + $0x30] sm:$0xff] %v2926
        %2971 = vst [vmem:[%s241 + $0x38] sm:$0xff] %v2951
        %2972 = vst [vmem:[%s241 + $0x40] sm:$0xff] %v2879
        %2973 = vst [vmem:[%s241 + $0x48] sm:$0xff] %v2904
        %2974 = vst [vmem:[%s241 + $0x50] sm:$0xff] %v2929
        %2975 = vst [vmem:[%s241 + $0x58] sm:$0xff] %v2954
        %2976 = vst [vmem:[%s241 + $0x60] sm:$0xff] %v2881
        %2977 = vst [vmem:[%s241 + $0x68] sm:$0xff] %v2906
        %2978 = vst [vmem:[%s241 + $0x70] sm:$0xff] %v2931
        %2979 = vst [vmem:[%s241 + $0x78] sm:$0xff] %v2956
        %s2980 = sand.u32 %s112, 1
        %s2981 = sand.u32 %s112, 1
        %s2982 = smul.addr %s2981, 128
        %s2983 = scalar_lea.vmem [#allocation3], %s2982
        // Predicated region
        $region60: #{autoencoder_forward.1} parent=54 // pred_check
          %p2984 = pneg %p122
        $region61: #{autoencoder_forward.1} parent=54 // pred_check_branch
          %2986 = sbr.rel (%p2984) target = $region63
        $region62: #{autoencoder_forward.1} parent=54 // pred_region
          %s2987 = smul.u32 4, %s15
          %s2988 = smul.addr %s2987, 8
          %s2989 = scalar_lea.vmem %s4, %s2988
          // Predicated region
          $region64: #{autoencoder_forward.1} parent=62 // pred_check
            _
          $region65: #{autoencoder_forward.1} parent=62 // pred_check_branch
            %2991 = sbr.rel (0) target = $region67
          $region66: #{autoencoder_forward.1} parent=62 // pred_region
            // Predicated region
            $region68: #{autoencoder_forward.1} parent=66 // pred_check
              _
            $region69: #{autoencoder_forward.1} parent=66 // pred_check_branch
              %2993 = sbr.rel (0) target = $region71
            $region70: #{autoencoder_forward.1} parent=66 // pred_region
              loop: start=0, step=1, limit=1
              $region72: #{autoencoder_forward.1} parent=70 // loop_pre_header
                _
              $region73: #{autoencoder_forward.1} parent=70 // loop_header
                %s2995 = sphi 0, %s2999
                %p2996 = scmp.ge.s32.totalorder %s2995, 1
                %s3000 = sphi %s2983, %s2983
                %s3001 = sphi %s2989, %s2989
              $region74: #{autoencoder_forward.1} parent=70 // loop_header_branch
                %2998 = sbr.rel (%p2996) target = $region78
              $region75: #{autoencoder_forward.1} parent=70 // loop_body
                %v3002 = vld [vmem:[%s3000] sm:$0xff]
                %3003 = vst [vmem:[%s3001] sm:$0xff] %v3002
                %v3004 = vld [vmem:[%s3000 + $0x8] sm:$0xff]
                %3005 = vst [vmem:[%s3001 + $0x8] sm:$0xff] %v3004
                %v3006 = vld [vmem:[%s3000 + $0x10] sm:$0xff]
                %3007 = vst [vmem:[%s3001 + $0x10] sm:$0xff] %v3006
                %v3008 = vld [vmem:[%s3000 + $0x18] sm:$0xff]
                %3009 = vst [vmem:[%s3001 + $0x18] sm:$0xff] %v3008
                %v3010 = vld [vmem:[%s3000 + $0x20] sm:$0xff]
                %3011 = vst [vmem:[%s3001 + $0x40] sm:$0xff] %v3010
                %v3012 = vld [vmem:[%s3000 + $0x28] sm:$0xff]
                %3013 = vst [vmem:[%s3001 + $0x48] sm:$0xff] %v3012
                %v3014 = vld [vmem:[%s3000 + $0x30] sm:$0xff]
                %3015 = vst [vmem:[%s3001 + $0x50] sm:$0xff] %v3014
                %v3016 = vld [vmem:[%s3000 + $0x38] sm:$0xff]
                %3017 = vst [vmem:[%s3001 + $0x58] sm:$0xff] %v3016
                %v3018 = vld [vmem:[%s3000 + $0x40] sm:$0xff]
                %3019 = vst [vmem:[%s3001 + $0x80] sm:$0xff] %v3018
                %v3020 = vld [vmem:[%s3000 + $0x48] sm:$0xff]
                %3021 = vst [vmem:[%s3001 + $0x88] sm:$0xff] %v3020
                %v3022 = vld [vmem:[%s3000 + $0x50] sm:$0xff]
                %3023 = vst [vmem:[%s3001 + $0x90] sm:$0xff] %v3022
                %v3024 = vld [vmem:[%s3000 + $0x58] sm:$0xff]
                %3025 = vst [vmem:[%s3001 + $0x98] sm:$0xff] %v3024
                %v3026 = vld [vmem:[%s3000 + $0x60] sm:$0xff]
                %3027 = vst [vmem:[%s3001 + $0xc0] sm:$0xff] %v3026
                %v3028 = vld [vmem:[%s3000 + $0x68] sm:$0xff]
                %3029 = vst [vmem:[%s3001 + $0xc8] sm:$0xff] %v3028
                %v3030 = vld [vmem:[%s3000 + $0x70] sm:$0xff]
                %3031 = vst [vmem:[%s3001 + $0xd0] sm:$0xff] %v3030
                %v3032 = vld [vmem:[%s3000 + $0x78] sm:$0xff]
                %3033 = vst [vmem:[%s3001 + $0xd8] sm:$0xff] %v3032
              $region76: #{autoencoder_forward.1} parent=70 // loop_footer
                %s2999 = sadd.s32 1, %s2995
              $region77: #{autoencoder_forward.1} parent=70 // loop_footer_branch
                %2994 = sbr.rel target = $region73
              $region78: #{autoencoder_forward.1} parent=70 // loop_exit
                _
            $region71: #{autoencoder_forward.1} parent=66 // pred_fallthru
              _
            // Predicated region
            $region79: #{autoencoder_forward.1} parent=66 // pred_check
              _
            $region80: #{autoencoder_forward.1} parent=66 // pred_check_branch
              %3035 = sbr.rel target = $region82
            $region81: #{autoencoder_forward.1} parent=66 // pred_region
              _
            $region82: #{autoencoder_forward.1} parent=66 // pred_fallthru
              _
          $region67: #{autoencoder_forward.1} parent=62 // pred_fallthru
            _
          %3036 = vnop
        $region63: #{autoencoder_forward.1} parent=54 // pred_fallthru
          _
      $region55: #{autoencoder_forward.1} parent=5 // pred_fallthru
        _
      %p3037 = scmp.le.s32.totalorder 2, %s10
      // Predicated region
      $region83: #{autoencoder_forward.1} parent=5 // pred_check
        %p3038 = pneg %p3037
      $region84: #{autoencoder_forward.1} parent=5 // pred_check_branch
        %3040 = sbr.rel (%p3038) target = $region86
      $region85: #{autoencoder_forward.1} parent=5 // pred_region
        %s3041 = ssub.s32 %s10, 2
        // Predicated region
        $region87: #{autoencoder_forward.1} parent=85 // pred_check
          %p3042 = pneg %p128
        $region88: #{autoencoder_forward.1} parent=85 // pred_check_branch
          %3044 = sbr.rel (%p3042) target = $region90
        $region89: #{autoencoder_forward.1} parent=85 // pred_region
          %s3045 = sand.u32 %s113, 1
          %s3046 = sand.u32 %s113, 1
          %s3047 = smul.addr %s3046, 128
          %s3048 = scalar_lea.vmem [#allocation3], %s3047
        $region90: #{autoencoder_forward.1} parent=85 // pred_fallthru
          _
      $region86: #{autoencoder_forward.1} parent=5 // pred_fallthru
        _
    $region6: #{autoencoder_forward.1} parent=1 // loop_footer
      %s14 = sadd.s32 1, %s10
    $region7: #{autoencoder_forward.1} parent=1 // loop_footer_branch
      %9 = sbr.rel target = $region3
    $region8: #{autoencoder_forward.1} parent=1 // loop_exit
      _

</llo_original>
